<compile_context>
chip_gen: v7x
topology: tpu7x:2x2x1
jax: 0.10.0
libtpu: 0.0.40
codegen_flags: <defaults>
</compile_context>

<pallas_src>
import functools
import math

import jax
import jax.numpy as jnp
from jax.experimental import pallas as pl
from jax.experimental.pallas import tpu as pltpu


def _patch_attention_kernel(
    x_ref,      # [Bt, N, K]  bf16 im2col patches
    wpe_ref,    # [K, E]      bf16 patch-embed weight (conv weight reshaped + T)
    wqkv_ref,   # [E, 3E]     bf16 fused QKV weight (Q part pre-scaled by 1/sqrt(dh))
    bqkv_ref,   # [1, 3E]     f32  fused QKV bias   (Q part pre-scaled)
    wo_ref,     # [E, E]      bf16 MHA out_proj weight
    vec_ref,    # [8, E]      f32  packed vectors: 0 conv_bias+pos, 1 out_proj bias,
                #             2 LN gamma, 3 LN beta, 4 final-linear weight row,
                #             5 final-linear bias (broadcast), 6-7 unused
    o_ref,      # [Bt, 1, N]  f32  sigmoid patch weights (lane-dense)
    ctx_ref,    # VMEM scratch [Bt, N, E] f32
    *,
    num_heads: int,
):
    Bt, N, K = x_ref.shape
    E = wo_ref.shape[0]
    dh = E // num_heads

    x = x_ref[...].reshape(Bt * N, K)

    # Patch embedding (strided conv as matmul) + conv bias + position embedding.
    emb = jnp.dot(x, wpe_ref[...], preferred_element_type=jnp.float32)
    emb = emb + vec_ref[0:1, :]

    # Fused QKV projection (single MXU pass; softmax scale folded into weights).
    qkv = jnp.dot(emb.astype(jnp.bfloat16), wqkv_ref[...],
                  preferred_element_type=jnp.float32) + bqkv_ref[...]
    q = qkv[:, 0:E].reshape(Bt, N, E).astype(jnp.bfloat16)
    k = qkv[:, E:2 * E].reshape(Bt, N, E).astype(jnp.bfloat16)
    v = qkv[:, 2 * E:3 * E].reshape(Bt, N, E).astype(jnp.bfloat16)

    # Per-head attention; one [Bt, N, N] score tensor live at a time, head
    # outputs written directly into the preallocated VMEM ctx buffer.
    for h in range(num_heads):
        lo, hi = h * dh, (h + 1) * dh
        qh = q[:, :, lo:hi]
        kh = k[:, :, lo:hi]
        vh = v[:, :, lo:hi]
        s = jnp.einsum("bnd,bmd->bnm", qh, kh,
                       preferred_element_type=jnp.float32)       # [Bt, N, N]
        s = s - jnp.max(s, axis=-1, keepdims=True)
        p = jnp.exp(s)
        p = p * pl.reciprocal(jnp.sum(p, axis=-1, keepdims=True), approx=True)
        ctx_ref[:, :, lo:hi] = jnp.einsum(
            "bnm,bmd->bnd", p.astype(jnp.bfloat16), vh,
            preferred_element_type=jnp.float32)                  # [Bt, N, dh]

    ctx = ctx_ref[...].reshape(Bt * N, E).astype(jnp.bfloat16)

    # MHA output projection.
    attn = jnp.dot(ctx, wo_ref[...], preferred_element_type=jnp.float32)
    attn = (attn + vec_ref[1:2, :]).reshape(Bt, N, E)

    # to_weight: LayerNorm -> Linear(E,1) as VPU multiply + lane reduce -> Sigmoid.
    mu = jnp.mean(attn, axis=-1, keepdims=True)
    var = jnp.mean((attn - mu) ** 2, axis=-1, keepdims=True)
    gamma = vec_ref[2:3, :].reshape(1, 1, E)
    beta = vec_ref[3:4, :].reshape(1, 1, E)
    ln = (attn - mu) * jax.lax.rsqrt(var + 1e-5) * gamma + beta
    wl = vec_ref[4:5, :].reshape(1, 1, E)
    logit = jnp.sum(ln * wl, axis=-1) + vec_ref[5:6, 0:1]        # [Bt, N]
    o_ref[...] = jax.nn.sigmoid(logit).reshape(Bt, 1, N)


def _pick_batch_tile(batch, n_tokens):
    # Pack enough images per grid step to feed >=128 rows into the MXU and
    # amortize per-grid-step pipeline overhead; keep Bt a divisor of B.
    target = max(1, -(-128 // n_tokens))
    bt = min(batch, target)
    while batch % bt != 0:
        bt -= 1
    return bt


def patch_attention_forward(x, kp, *, patch_size, num_heads):
    """x: [B, C, H, W] (NCHW). Returns [B, 1, H//P, W//P]."""
    B, C, H, W = x.shape
    P = patch_size
    new_H, new_W = (H // P) * P, (W // P) * P
    x = x[:, :, :new_H, :new_W]
    H_out, W_out = new_H // P, new_W // P
    N = H_out * W_out
    K = C * P * P
    E = kp["w_pe"].shape[1]

    # im2col: [B, N, K]; per-patch flatten order (c, ph, pw) matches the
    # PyTorch conv-weight flatten. bf16 halves DMA bytes into the kernel.
    patches = x.reshape(B, C, H_out, P, W_out, P)
    patches = patches.transpose(0, 2, 4, 1, 3, 5).reshape(B, N, K)
    patches = patches.astype(jnp.bfloat16)

    Bt = _pick_batch_tile(B, N)
    grid = (B // Bt,)

    def full(shape):
        return pl.BlockSpec(shape, lambda b: (0,) * len(shape))

    # Explicit VMEM budget: 2x-buffered input blocks + ctx scratch + headroom
    # for in-kernel activations (clamped to a safe range for v5e/v6e/v7x).
    in_bytes = (Bt * N * K * 2 + K * E * 2 + E * 3 * E * 2 + 3 * E * 4
                + E * E * 2 + 8 * E * 4 + Bt * N * 4)
    act_bytes = Bt * N * (20 * E + 2 * N) * 4 + Bt * N * E * 4
    vmem_limit = int(min(max(2 * in_bytes + act_bytes + (2 << 20), 8 << 20),
                         32 << 20))

    kernel = functools.partial(_patch_attention_kernel, num_heads=num_heads)
    out = pl.pallas_call(
        kernel,
        out_shape=jax.ShapeDtypeStruct((B, 1, N), jnp.float32),
        grid=grid,
        in_specs=[
            pl.BlockSpec((Bt, N, K), lambda b: (b, 0, 0)),  # patches
            full((K, E)),        # w_pe
            full((E, 3 * E)),    # fused QKV weight
            full((1, 3 * E)),    # fused QKV bias
            full((E, E)),        # out_proj weight
            full((8, E)),        # packed small vectors
        ],
        out_specs=pl.BlockSpec((Bt, 1, N), lambda b: (b, 0, 0)),
        scratch_shapes=[pltpu.VMEM((Bt, N, E), jnp.float32)],
        compiler_params=pltpu.CompilerParams(
            dimension_semantics=("parallel",),
            vmem_limit_bytes=vmem_limit,
        ),
    )(patches, kp["w_pe"], kp["wqkv"], kp["bqkv"], kp["wo"], kp["vecs"])

    # [B, 1, N] (lane-dense) -> [B, 1, H_out, W_out]
    return out.reshape(B, H_out, W_out)[:, None, :, :]


def make_raw_params(key, in_channels, patch_size, embed_dim):
    """Deterministic synthetic parameters with PyTorch-module shapes."""
    P, E, C = patch_size, embed_dim, in_channels
    keys = jax.random.split(key, 9)
    n = lambda k, shape, s=0.05: jax.random.normal(k, shape, jnp.float32) * s
    return {
        "w_conv": n(keys[0], (E, C, P, P)),       # Conv2d weight
        "b_conv": n(keys[1], (E,)),               # Conv2d bias
        "pos": jax.random.normal(keys[2], (E,), jnp.float32),  # pos emb [1,1,E]
        "in_proj_w": n(keys[3], (3 * E, E)),      # MHA in_proj_weight
        "in_proj_b": n(keys[4], (3 * E,)),        # MHA in_proj_bias
        "wo": n(keys[5], (E, E)),                 # MHA out_proj.weight
        "bo": n(keys[6], (E,)),                   # MHA out_proj.bias
        "ln_g": jnp.ones((E,), jnp.float32),
        "ln_b": jnp.zeros((E,), jnp.float32),
        "w_lin": n(keys[7], (1, E)),              # Linear(E,1).weight
        "b_lin": n(keys[8], (1,)),                # Linear(E,1).bias
    }


def prepare_kernel_params(raw, *, num_heads):
    """Fuse/fold/pack raw params into the kernel layout (bf16 MXU weights)."""
    E, C, P, _ = raw["w_conv"].shape
    K = C * P * P
    dh = E // num_heads
    scale = 1.0 / math.sqrt(dh)

    wq, wk, wv = jnp.split(raw["in_proj_w"], 3, axis=0)
    bq, bk, bv = jnp.split(raw["in_proj_b"], 3, axis=0)
    wqkv = jnp.concatenate([wq.T * scale, wk.T, wv.T], axis=1)   # [E, 3E]
    bqkv = jnp.concatenate([bq * scale, bk, bv])[None, :]        # [1, 3E]

    vecs = jnp.zeros((8, E), jnp.float32)
    vecs = vecs.at[0].set(raw["b_conv"] + raw["pos"])
    vecs = vecs.at[1].set(raw["bo"])
    vecs = vecs.at[2].set(raw["ln_g"])
    vecs = vecs.at[3].set(raw["ln_b"])
    vecs = vecs.at[4].set(raw["w_lin"][0])
    vecs = vecs.at[5].set(jnp.full((E,), raw["b_lin"][0]))

    return {
        "w_pe": raw["w_conv"].reshape(E, K).T.astype(jnp.bfloat16),  # [K, E]
        "wqkv": wqkv.astype(jnp.bfloat16),
        "bqkv": bqkv.astype(jnp.float32),
        "wo": raw["wo"].T.astype(jnp.bfloat16),                      # [E, E]
        "vecs": vecs,
    }


def _reference_forward(x, raw, *, patch_size, num_heads):
    """Pure-JAX f32 reference of the module's forward pass."""
    B, C, H, W = x.shape
    P = patch_size
    H_out, W_out = H // P, W // P
    N = H_out * W_out
    K = C * P * P
    E = raw["w_conv"].shape[0]
    patches = x.reshape(B, C, H_out, P, W_out, P).transpose(0, 2, 4, 1, 3, 5)
    patches = patches.reshape(B, N, K).astype(jnp.float32)
    emb = patches @ raw["w_conv"].reshape(E, K).T + raw["b_conv"] + raw["pos"]
    wq, wk, wv = jnp.split(raw["in_proj_w"], 3, axis=0)
    bq, bk, bv = jnp.split(raw["in_proj_b"], 3, axis=0)
    q = emb @ wq.T + bq
    k = emb @ wk.T + bk
    v = emb @ wv.T + bv
    dh = E // num_heads
    q = q.reshape(B, N, num_heads, dh)
    k = k.reshape(B, N, num_heads, dh)
    v = v.reshape(B, N, num_heads, dh)
    s = jnp.einsum("bnhd,bmhd->bhnm", q, k) / math.sqrt(dh)
    p = jax.nn.softmax(s, axis=-1)
    ctx = jnp.einsum("bhnm,bmhd->bnhd", p, v).reshape(B, N, E)
    attn = ctx @ raw["wo"].T + raw["bo"]
    mu = attn.mean(-1, keepdims=True)
    var = ((attn - mu) ** 2).mean(-1, keepdims=True)
    ln = (attn - mu) * jax.lax.rsqrt(var + 1e-5) * raw["ln_g"] + raw["ln_b"]
    w = jax.nn.sigmoid(ln @ raw["w_lin"].T + raw["b_lin"])
    return w.reshape(B, H_out, W_out)[:, None, :, :]


if __name__ == "__main__":
    B, C, H, W = 2, 4, 16, 16
    PATCH = 4
    EMBED = 32
    HEADS = 4

    key = jax.random.PRNGKey(0)
    kx, kp = jax.random.split(key)
    x = jax.random.normal(kx, (B, C, H, W), jnp.float32)

    raw = make_raw_params(kp, C, PATCH, EMBED)
    kparams = prepare_kernel_params(raw, num_heads=HEADS)

    out = patch_attention_forward(x, kparams, patch_size=PATCH, num_heads=HEADS)
    out = jax.block_until_ready(out)
    assert out.shape == (B, 1, H // PATCH, W // PATCH), out.shape

    ref = jax.block_until_ready(
        _reference_forward(x, raw, patch_size=PATCH, num_heads=HEADS))
    err = float(jnp.max(jnp.abs(out - ref)))
    # Kernel uses bf16 MXU operands + approximate softmax reciprocal; reference
    # is pure f32 -> loose-but-meaningful tolerance (expected error ~1e-3).
    assert err < 1.5e-2, err

    print("KERNEL_OK")
</pallas_src>

<mosaic_0001>
module attributes {stable_mosaic.version = 11 : i64} {
  func.func @_patch_attention_kernel(%arg0: i32, %arg1: memref<2x16x64xbf16, #tpu.memory_space<vmem>>, %arg2: memref<64x32xbf16, #tpu.memory_space<vmem>>, %arg3: memref<32x96xbf16, #tpu.memory_space<vmem>>, %arg4: memref<1x96xf32, #tpu.memory_space<vmem>>, %arg5: memref<32x32xbf16, #tpu.memory_space<vmem>>, %arg6: memref<8x32xf32, #tpu.memory_space<vmem>>, %arg7: memref<2x1x16xf32, #tpu.memory_space<vmem>>, %arg8: memref<2x16x32xf32, #tpu.memory_space<vmem>>) attributes {dimension_semantics = [#tpu.dimension_semantics<parallel>], iteration_bounds = array<i64: 1>, scalar_prefetch = 0 : i64, scratch_operands = 1 : i64, tpu.core_type = #tpu.core_type<tc>, window_params = [{transform_indices = @transform_0, window_bounds = array<i64: 2, 16, 64>}, {pipeline_mode = #tpu.pipeline_mode<synchronous>, transform_indices = @transform_1, window_bounds = array<i64: 64, 32>}, {pipeline_mode = #tpu.pipeline_mode<synchronous>, transform_indices = @transform_2, window_bounds = array<i64: 32, 96>}, {pipeline_mode = #tpu.pipeline_mode<synchronous>, transform_indices = @transform_3, window_bounds = array<i64: 1, 96>}, {pipeline_mode = #tpu.pipeline_mode<synchronous>, transform_indices = @transform_4, window_bounds = array<i64: 32, 32>}, {pipeline_mode = #tpu.pipeline_mode<synchronous>, transform_indices = @transform_5, window_bounds = array<i64: 8, 32>}, {transform_indices = @transform_6, window_bounds = array<i64: 2, 1, 16>}]} {
    %c0 = arith.constant 0 : index
    %c0_0 = arith.constant 0 : index
    %c0_1 = arith.constant 0 : index
    %0 = vector.load %arg1[%c0, %c0_0, %c0_1] : memref<2x16x64xbf16, #tpu.memory_space<vmem>>, vector<2x16x64xbf16>
    %1 = vector.shape_cast %0 : vector<2x16x64xbf16> to vector<32x64xbf16>
    %c0_2 = arith.constant 0 : index
    %c0_3 = arith.constant 0 : index
    %2 = vector.load %arg2[%c0_2, %c0_3] : memref<64x32xbf16, #tpu.memory_space<vmem>>, vector<64x32xbf16>
    %cst = arith.constant dense<0.000000e+00> : vector<32x32xf32>
    %3 = tpu.matmul %1, %2, %cst {dimension_numbers = #tpu.dot_dimension_numbers<[1], [0], [0], [1], [0, 0, 1, 1], [], []>} : vector<32x64xbf16>, vector<64x32xbf16>, vector<32x32xf32> -> vector<32x32xf32>
    %c0_4 = arith.constant 0 : index
    %c0_5 = arith.constant 0 : index
    %4 = vector.load %arg6[%c0_4, %c0_5] : memref<8x32xf32, #tpu.memory_space<vmem>>, vector<1x32xf32>
    %5 = vector.broadcast %4 : vector<1x32xf32> to vector<32x32xf32>
    %6 = arith.addf %3, %5 : vector<32x32xf32>
    %7 = arith.truncf %6 : vector<32x32xf32> to vector<32x32xbf16>
    %c0_6 = arith.constant 0 : index
    %c0_7 = arith.constant 0 : index
    %8 = vector.load %arg3[%c0_6, %c0_7] : memref<32x96xbf16, #tpu.memory_space<vmem>>, vector<32x96xbf16>
    %cst_8 = arith.constant dense<0.000000e+00> : vector<32x96xf32>
    %9 = tpu.matmul %7, %8, %cst_8 {dimension_numbers = #tpu.dot_dimension_numbers<[1], [0], [0], [1], [0, 0, 1, 1], [], []>} : vector<32x32xbf16>, vector<32x96xbf16>, vector<32x96xf32> -> vector<32x96xf32>
    %c0_9 = arith.constant 0 : index
    %c0_10 = arith.constant 0 : index
    %10 = vector.load %arg4[%c0_9, %c0_10] : memref<1x96xf32, #tpu.memory_space<vmem>>, vector<1x96xf32>
    %11 = vector.broadcast %10 : vector<1x96xf32> to vector<32x96xf32>
    %12 = arith.addf %9, %11 : vector<32x96xf32>
    %13 = vector.extract_strided_slice %12 {offsets = [0, 0], sizes = [32, 32], strides = [1, 1]} : vector<32x96xf32> to vector<32x32xf32>
    %14 = vector.shape_cast %13 : vector<32x32xf32> to vector<2x16x32xf32>
    %15 = arith.truncf %14 : vector<2x16x32xf32> to vector<2x16x32xbf16>
    %16 = vector.extract_strided_slice %12 {offsets = [0, 32], sizes = [32, 32], strides = [1, 1]} : vector<32x96xf32> to vector<32x32xf32>
    %17 = vector.shape_cast %16 : vector<32x32xf32> to vector<2x16x32xf32>
    %18 = arith.truncf %17 : vector<2x16x32xf32> to vector<2x16x32xbf16>
    %19 = vector.extract_strided_slice %12 {offsets = [0, 64], sizes = [32, 32], strides = [1, 1]} : vector<32x96xf32> to vector<32x32xf32>
    %20 = vector.shape_cast %19 : vector<32x32xf32> to vector<2x16x32xf32>
    %21 = arith.truncf %20 : vector<2x16x32xf32> to vector<2x16x32xbf16>
    %22 = vector.extract_strided_slice %15 {offsets = [0, 0, 0], sizes = [2, 16, 8], strides = [1, 1, 1]} : vector<2x16x32xbf16> to vector<2x16x8xbf16>
    %23 = vector.extract_strided_slice %18 {offsets = [0, 0, 0], sizes = [2, 16, 8], strides = [1, 1, 1]} : vector<2x16x32xbf16> to vector<2x16x8xbf16>
    %24 = vector.extract_strided_slice %21 {offsets = [0, 0, 0], sizes = [2, 16, 8], strides = [1, 1, 1]} : vector<2x16x32xbf16> to vector<2x16x8xbf16>
    "tpu.trace_start"() <{level = 10 : i32, message = "bnd,bmd->bnm"}> : () -> ()
    %cst_11 = arith.constant dense<0.000000e+00> : vector<2x16x16xf32>
    %25 = tpu.matmul %22, %23, %cst_11 {dimension_numbers = #tpu.dot_dimension_numbers<[2], [2], [1], [1], [0, 0, 0, 1, 1, 1], [0], [0]>} : vector<2x16x8xbf16>, vector<2x16x8xbf16>, vector<2x16x16xf32> -> vector<2x16x16xf32>
    "tpu.trace_stop"() : () -> ()
    %cst_12 = arith.constant dense<0xFF800000> : vector<2x16xf32>
    %26 = vector.multi_reduction <maximumf>, %25, %cst_12 [2] : vector<2x16x16xf32> to vector<2x16xf32>
    %27 = vector.shape_cast %26 : vector<2x16xf32> to vector<2x16x1xf32>
    %28 = vector.broadcast %27 : vector<2x16x1xf32> to vector<2x16x16xf32>
    %29 = arith.subf %25, %28 : vector<2x16x16xf32>
    %30 = math.exp %29 : vector<2x16x16xf32>
    %cst_13 = arith.constant dense<0.000000e+00> : vector<2x16xf32>
    %31 = vector.multi_reduction <add>, %30, %cst_13 [2] : vector<2x16x16xf32> to vector<2x16xf32>
    %32 = vector.shape_cast %31 : vector<2x16xf32> to vector<2x16x1xf32>
    %33 = tpu.reciprocal %32 {approx = true} : vector<2x16x1xf32> -> vector<2x16x1xf32>
    %34 = vector.broadcast %33 : vector<2x16x1xf32> to vector<2x16x16xf32>
    %35 = arith.mulf %30, %34 : vector<2x16x16xf32>
    %36 = arith.truncf %35 : vector<2x16x16xf32> to vector<2x16x16xbf16>
    "tpu.trace_start"() <{level = 10 : i32, message = "bnm,bmd->bnd"}> : () -> ()
    %cst_14 = arith.constant dense<0.000000e+00> : vector<2x16x8xf32>
    %37 = tpu.matmul %36, %24, %cst_14 {dimension_numbers = #tpu.dot_dimension_numbers<[2], [1], [1], [2], [0, 0, 0, 1, 1, 2], [0], [0]>} : vector<2x16x16xbf16>, vector<2x16x8xbf16>, vector<2x16x8xf32> -> vector<2x16x8xf32>
    "tpu.trace_stop"() : () -> ()
    %c0_15 = arith.constant 0 : index
    %c0_16 = arith.constant 0 : index
    %c0_17 = arith.constant 0 : index
    %38 = vector.load %arg8[%c0_15, %c0_16, %c0_17] : memref<2x16x32xf32, #tpu.memory_space<vmem>>, vector<2x16x8xf32>
    tpu.vector_store %arg8[%c0_15, %c0_16, %c0_17], %37 {strides = array<i32>} : memref<2x16x32xf32, #tpu.memory_space<vmem>>, vector<2x16x8xf32>,
    %39 = vector.extract_strided_slice %15 {offsets = [0, 0, 8], sizes = [2, 16, 8], strides = [1, 1, 1]} : vector<2x16x32xbf16> to vector<2x16x8xbf16>
    %40 = vector.extract_strided_slice %18 {offsets = [0, 0, 8], sizes = [2, 16, 8], strides = [1, 1, 1]} : vector<2x16x32xbf16> to vector<2x16x8xbf16>
    %41 = vector.extract_strided_slice %21 {offsets = [0, 0, 8], sizes = [2, 16, 8], strides = [1, 1, 1]} : vector<2x16x32xbf16> to vector<2x16x8xbf16>
    "tpu.trace_start"() <{level = 10 : i32, message = "bnd,bmd->bnm"}> : () -> ()
    %cst_18 = arith.constant dense<0.000000e+00> : vector<2x16x16xf32>
    %42 = tpu.matmul %39, %40, %cst_18 {dimension_numbers = #tpu.dot_dimension_numbers<[2], [2], [1], [1], [0, 0, 0, 1, 1, 1], [0], [0]>} : vector<2x16x8xbf16>, vector<2x16x8xbf16>, vector<2x16x16xf32> -> vector<2x16x16xf32>
    "tpu.trace_stop"() : () -> ()
    %cst_19 = arith.constant dense<0xFF800000> : vector<2x16xf32>
    %43 = vector.multi_reduction <maximumf>, %42, %cst_19 [2] : vector<2x16x16xf32> to vector<2x16xf32>
    %44 = vector.shape_cast %43 : vector<2x16xf32> to vector<2x16x1xf32>
    %45 = vector.broadcast %44 : vector<2x16x1xf32> to vector<2x16x16xf32>
    %46 = arith.subf %42, %45 : vector<2x16x16xf32>
    %47 = math.exp %46 : vector<2x16x16xf32>
    %cst_20 = arith.constant dense<0.000000e+00> : vector<2x16xf32>
    %48 = vector.multi_reduction <add>, %47, %cst_20 [2] : vector<2x16x16xf32> to vector<2x16xf32>
    %49 = vector.shape_cast %48 : vector<2x16xf32> to vector<2x16x1xf32>
    %50 = tpu.reciprocal %49 {approx = true} : vector<2x16x1xf32> -> vector<2x16x1xf32>
    %51 = vector.broadcast %50 : vector<2x16x1xf32> to vector<2x16x16xf32>
    %52 = arith.mulf %47, %51 : vector<2x16x16xf32>
    %53 = arith.truncf %52 : vector<2x16x16xf32> to vector<2x16x16xbf16>
    "tpu.trace_start"() <{level = 10 : i32, message = "bnm,bmd->bnd"}> : () -> ()
    %cst_21 = arith.constant dense<0.000000e+00> : vector<2x16x8xf32>
    %54 = tpu.matmul %53, %41, %cst_21 {dimension_numbers = #tpu.dot_dimension_numbers<[2], [1], [1], [2], [0, 0, 0, 1, 1, 2], [0], [0]>} : vector<2x16x16xbf16>, vector<2x16x8xbf16>, vector<2x16x8xf32> -> vector<2x16x8xf32>
    "tpu.trace_stop"() : () -> ()
    %c0_22 = arith.constant 0 : index
    %c0_23 = arith.constant 0 : index
    %c8 = arith.constant 8 : index
    %55 = vector.load %arg8[%c0_22, %c0_23, %c8] : memref<2x16x32xf32, #tpu.memory_space<vmem>>, vector<2x16x8xf32>
    tpu.vector_store %arg8[%c0_22, %c0_23, %c8], %54 {strides = array<i32>} : memref<2x16x32xf32, #tpu.memory_space<vmem>>, vector<2x16x8xf32>,
    %56 = vector.extract_strided_slice %15 {offsets = [0, 0, 16], sizes = [2, 16, 8], strides = [1, 1, 1]} : vector<2x16x32xbf16> to vector<2x16x8xbf16>
    %57 = vector.extract_strided_slice %18 {offsets = [0, 0, 16], sizes = [2, 16, 8], strides = [1, 1, 1]} : vector<2x16x32xbf16> to vector<2x16x8xbf16>
    %58 = vector.extract_strided_slice %21 {offsets = [0, 0, 16], sizes = [2, 16, 8], strides = [1, 1, 1]} : vector<2x16x32xbf16> to vector<2x16x8xbf16>
    "tpu.trace_start"() <{level = 10 : i32, message = "bnd,bmd->bnm"}> : () -> ()
    %cst_24 = arith.constant dense<0.000000e+00> : vector<2x16x16xf32>
    %59 = tpu.matmul %56, %57, %cst_24 {dimension_numbers = #tpu.dot_dimension_numbers<[2], [2], [1], [1], [0, 0, 0, 1, 1, 1], [0], [0]>} : vector<2x16x8xbf16>, vector<2x16x8xbf16>, vector<2x16x16xf32> -> vector<2x16x16xf32>
    "tpu.trace_stop"() : () -> ()
    %cst_25 = arith.constant dense<0xFF800000> : vector<2x16xf32>
    %60 = vector.multi_reduction <maximumf>, %59, %cst_25 [2] : vector<2x16x16xf32> to vector<2x16xf32>
    %61 = vector.shape_cast %60 : vector<2x16xf32> to vector<2x16x1xf32>
    %62 = vector.broadcast %61 : vector<2x16x1xf32> to vector<2x16x16xf32>
    %63 = arith.subf %59, %62 : vector<2x16x16xf32>
    %64 = math.exp %63 : vector<2x16x16xf32>
    %cst_26 = arith.constant dense<0.000000e+00> : vector<2x16xf32>
    %65 = vector.multi_reduction <add>, %64, %cst_26 [2] : vector<2x16x16xf32> to vector<2x16xf32>
    %66 = vector.shape_cast %65 : vector<2x16xf32> to vector<2x16x1xf32>
    %67 = tpu.reciprocal %66 {approx = true} : vector<2x16x1xf32> -> vector<2x16x1xf32>
    %68 = vector.broadcast %67 : vector<2x16x1xf32> to vector<2x16x16xf32>
    %69 = arith.mulf %64, %68 : vector<2x16x16xf32>
    %70 = arith.truncf %69 : vector<2x16x16xf32> to vector<2x16x16xbf16>
    "tpu.trace_start"() <{level = 10 : i32, message = "bnm,bmd->bnd"}> : () -> ()
    %cst_27 = arith.constant dense<0.000000e+00> : vector<2x16x8xf32>
    %71 = tpu.matmul %70, %58, %cst_27 {dimension_numbers = #tpu.dot_dimension_numbers<[2], [1], [1], [2], [0, 0, 0, 1, 1, 2], [0], [0]>} : vector<2x16x16xbf16>, vector<2x16x8xbf16>, vector<2x16x8xf32> -> vector<2x16x8xf32>
    "tpu.trace_stop"() : () -> ()
    %c0_28 = arith.constant 0 : index
    %c0_29 = arith.constant 0 : index
    %c16 = arith.constant 16 : index
    %72 = vector.load %arg8[%c0_28, %c0_29, %c16] : memref<2x16x32xf32, #tpu.memory_space<vmem>>, vector<2x16x8xf32>
    tpu.vector_store %arg8[%c0_28, %c0_29, %c16], %71 {strides = array<i32>} : memref<2x16x32xf32, #tpu.memory_space<vmem>>, vector<2x16x8xf32>,
    %73 = vector.extract_strided_slice %15 {offsets = [0, 0, 24], sizes = [2, 16, 8], strides = [1, 1, 1]} : vector<2x16x32xbf16> to vector<2x16x8xbf16>
    %74 = vector.extract_strided_slice %18 {offsets = [0, 0, 24], sizes = [2, 16, 8], strides = [1, 1, 1]} : vector<2x16x32xbf16> to vector<2x16x8xbf16>
    %75 = vector.extract_strided_slice %21 {offsets = [0, 0, 24], sizes = [2, 16, 8], strides = [1, 1, 1]} : vector<2x16x32xbf16> to vector<2x16x8xbf16>
    "tpu.trace_start"() <{level = 10 : i32, message = "bnd,bmd->bnm"}> : () -> ()
    %cst_30 = arith.constant dense<0.000000e+00> : vector<2x16x16xf32>
    %76 = tpu.matmul %73, %74, %cst_30 {dimension_numbers = #tpu.dot_dimension_numbers<[2], [2], [1], [1], [0, 0, 0, 1, 1, 1], [0], [0]>} : vector<2x16x8xbf16>, vector<2x16x8xbf16>, vector<2x16x16xf32> -> vector<2x16x16xf32>
    "tpu.trace_stop"() : () -> ()
    %cst_31 = arith.constant dense<0xFF800000> : vector<2x16xf32>
    %77 = vector.multi_reduction <maximumf>, %76, %cst_31 [2] : vector<2x16x16xf32> to vector<2x16xf32>
    %78 = vector.shape_cast %77 : vector<2x16xf32> to vector<2x16x1xf32>
    %79 = vector.broadcast %78 : vector<2x16x1xf32> to vector<2x16x16xf32>
    %80 = arith.subf %76, %79 : vector<2x16x16xf32>
    %81 = math.exp %80 : vector<2x16x16xf32>
    %cst_32 = arith.constant dense<0.000000e+00> : vector<2x16xf32>
    %82 = vector.multi_reduction <add>, %81, %cst_32 [2] : vector<2x16x16xf32> to vector<2x16xf32>
    %83 = vector.shape_cast %82 : vector<2x16xf32> to vector<2x16x1xf32>
    %84 = tpu.reciprocal %83 {approx = true} : vector<2x16x1xf32> -> vector<2x16x1xf32>
    %85 = vector.broadcast %84 : vector<2x16x1xf32> to vector<2x16x16xf32>
    %86 = arith.mulf %81, %85 : vector<2x16x16xf32>
    %87 = arith.truncf %86 : vector<2x16x16xf32> to vector<2x16x16xbf16>
    "tpu.trace_start"() <{level = 10 : i32, message = "bnm,bmd->bnd"}> : () -> ()
    %cst_33 = arith.constant dense<0.000000e+00> : vector<2x16x8xf32>
    %88 = tpu.matmul %87, %75, %cst_33 {dimension_numbers = #tpu.dot_dimension_numbers<[2], [1], [1], [2], [0, 0, 0, 1, 1, 2], [0], [0]>} : vector<2x16x16xbf16>, vector<2x16x8xbf16>, vector<2x16x8xf32> -> vector<2x16x8xf32>
    "tpu.trace_stop"() : () -> ()
    %c0_34 = arith.constant 0 : index
    %c0_35 = arith.constant 0 : index
    %c24 = arith.constant 24 : index
    %89 = vector.load %arg8[%c0_34, %c0_35, %c24] : memref<2x16x32xf32, #tpu.memory_space<vmem>>, vector<2x16x8xf32>
    tpu.vector_store %arg8[%c0_34, %c0_35, %c24], %88 {strides = array<i32>} : memref<2x16x32xf32, #tpu.memory_space<vmem>>, vector<2x16x8xf32>,
    %c0_36 = arith.constant 0 : index
    %c0_37 = arith.constant 0 : index
    %c0_38 = arith.constant 0 : index
    %90 = vector.load %arg8[%c0_36, %c0_37, %c0_38] : memref<2x16x32xf32, #tpu.memory_space<vmem>>, vector<2x16x32xf32>
    %91 = vector.shape_cast %90 : vector<2x16x32xf32> to vector<32x32xf32>
    %92 = arith.truncf %91 : vector<32x32xf32> to vector<32x32xbf16>
    %c0_39 = arith.constant 0 : index
    %c0_40 = arith.constant 0 : index
    %93 = vector.load %arg5[%c0_39, %c0_40] : memref<32x32xbf16, #tpu.memory_space<vmem>>, vector<32x32xbf16>
    %cst_41 = arith.constant dense<0.000000e+00> : vector<32x32xf32>
    %94 = tpu.matmul %92, %93, %cst_41 {dimension_numbers = #tpu.dot_dimension_numbers<[1], [0], [0], [1], [0, 0, 1, 1], [], []>} : vector<32x32xbf16>, vector<32x32xbf16>, vector<32x32xf32> -> vector<32x32xf32>
    %c1 = arith.constant 1 : index
    %c0_42 = arith.constant 0 : index
    %95 = vector.load %arg6[%c1, %c0_42] : memref<8x32xf32, #tpu.memory_space<vmem>>, vector<1x32xf32>
    %96 = vector.broadcast %95 : vector<1x32xf32> to vector<32x32xf32>
    %97 = arith.addf %94, %96 : vector<32x32xf32>
    %98 = vector.shape_cast %97 : vector<32x32xf32> to vector<2x16x32xf32>
    %cst_43 = arith.constant dense<0.000000e+00> : vector<2x16xf32>
    %99 = vector.multi_reduction <add>, %98, %cst_43 [2] : vector<2x16x32xf32> to vector<2x16xf32>
    %100 = vector.shape_cast %99 : vector<2x16xf32> to vector<2x16x1xf32>
    %cst_44 = arith.constant 3.200000e+01 : f32
    %101 = vector.broadcast %cst_44 : f32 to vector<2x16x1xf32>
    %102 = arith.divf %100, %101 : vector<2x16x1xf32>
    %103 = vector.broadcast %102 : vector<2x16x1xf32> to vector<2x16x32xf32>
    %104 = arith.subf %98, %103 : vector<2x16x32xf32>
    %105 = arith.mulf %104, %104 : vector<2x16x32xf32>
    %cst_45 = arith.constant dense<0.000000e+00> : vector<2x16xf32>
    %106 = vector.multi_reduction <add>, %105, %cst_45 [2] : vector<2x16x32xf32> to vector<2x16xf32>
    %107 = vector.shape_cast %106 : vector<2x16xf32> to vector<2x16x1xf32>
    %cst_46 = arith.constant 3.200000e+01 : f32
    %108 = vector.broadcast %cst_46 : f32 to vector<2x16x1xf32>
    %109 = arith.divf %107, %108 : vector<2x16x1xf32>
    %c2 = arith.constant 2 : index
    %c0_47 = arith.constant 0 : index
    %110 = vector.load %arg6[%c2, %c0_47] : memref<8x32xf32, #tpu.memory_space<vmem>>, vector<1x32xf32>
    %111 = vector.shape_cast %110 : vector<1x32xf32> to vector<1x1x32xf32>
    %c3 = arith.constant 3 : index
    %c0_48 = arith.constant 0 : index
    %112 = vector.load %arg6[%c3, %c0_48] : memref<8x32xf32, #tpu.memory_space<vmem>>, vector<1x32xf32>
    %113 = vector.shape_cast %112 : vector<1x32xf32> to vector<1x1x32xf32>
    %114 = vector.broadcast %102 : vector<2x16x1xf32> to vector<2x16x32xf32>
    %115 = arith.subf %98, %114 : vector<2x16x32xf32>
    %cst_49 = arith.constant 9.99999974E-6 : f32
    %116 = vector.broadcast %cst_49 : f32 to vector<2x16x1xf32>
    %117 = arith.addf %109, %116 : vector<2x16x1xf32>
    %118 = math.rsqrt %117 : vector<2x16x1xf32>
    %119 = vector.broadcast %118 : vector<2x16x1xf32> to vector<2x16x32xf32>
    %120 = arith.mulf %115, %119 : vector<2x16x32xf32>
    %121 = vector.broadcast %111 : vector<1x1x32xf32> to vector<2x16x32xf32>
    %122 = arith.mulf %120, %121 : vector<2x16x32xf32>
    %123 = vector.broadcast %113 : vector<1x1x32xf32> to vector<2x16x32xf32>
    %124 = arith.addf %122, %123 : vector<2x16x32xf32>
    %c4 = arith.constant 4 : index
    %c0_50 = arith.constant 0 : index
    %125 = vector.load %arg6[%c4, %c0_50] : memref<8x32xf32, #tpu.memory_space<vmem>>, vector<1x32xf32>
    %126 = vector.shape_cast %125 : vector<1x32xf32> to vector<1x1x32xf32>
    %127 = vector.broadcast %126 : vector<1x1x32xf32> to vector<2x16x32xf32>
    %128 = arith.mulf %124, %127 : vector<2x16x32xf32>
    %cst_51 = arith.constant dense<0.000000e+00> : vector<2x16xf32>
    %129 = vector.multi_reduction <add>, %128, %cst_51 [2] : vector<2x16x32xf32> to vector<2x16xf32>
    %c5 = arith.constant 5 : index
    %c0_52 = arith.constant 0 : index
    %130 = vector.load %arg6[%c5, %c0_52] : memref<8x32xf32, #tpu.memory_space<vmem>>, vector<1x1xf32>
    %131 = vector.broadcast %130 : vector<1x1xf32> to vector<2x16xf32>
    %132 = arith.addf %129, %131 : vector<2x16xf32>
    %133 = arith.negf %132 : vector<2x16xf32>
    %134 = math.exp %133 : vector<2x16xf32>
    %cst_53 = arith.constant 1.000000e+00 : f32
    %135 = vector.broadcast %cst_53 : f32 to vector<2x16xf32>
    %136 = arith.addf %135, %134 : vector<2x16xf32>
    %137 = arith.divf %135, %136 : vector<2x16xf32>
    %138 = vector.shape_cast %137 : vector<2x16xf32> to vector<2x1x16xf32>
    %c0_54 = arith.constant 0 : index
    %c0_55 = arith.constant 0 : index
    %c0_56 = arith.constant 0 : index
    %139 = vector.load %arg7[%c0_54, %c0_55, %c0_56] : memref<2x1x16xf32, #tpu.memory_space<vmem>>, vector<2x1x16xf32>
    tpu.vector_store %arg7[%c0_54, %c0_55, %c0_56], %138 {strides = array<i32>} : memref<2x1x16xf32, #tpu.memory_space<vmem>>, vector<2x1x16xf32>,
    return
  }
  func.func @transform_0(%arg0: i32) -> (i32, i32, i32) {
    %c0_i32 = arith.constant 0 : i32
    %c0_i32_0 = arith.constant 0 : i32
    %c0_i32_1 = arith.constant 0 : i32
    return %arg0, %c0_i32, %c0_i32_0 : i32, i32, i32
  }
  func.func @transform_1(%arg0: i32) -> (i32, i32) {
    %c0_i32 = arith.constant 0 : i32
    %c0_i32_0 = arith.constant 0 : i32
    %c0_i32_1 = arith.constant 0 : i32
    return %c0_i32, %c0_i32_0 : i32, i32
  }
  func.func @transform_2(%arg0: i32) -> (i32, i32) {
    %c0_i32 = arith.constant 0 : i32
    %c0_i32_0 = arith.constant 0 : i32
    %c0_i32_1 = arith.constant 0 : i32
    return %c0_i32, %c0_i32_0 : i32, i32
  }
  func.func @transform_3(%arg0: i32) -> (i32, i32) {
    %c0_i32 = arith.constant 0 : i32
    %c0_i32_0 = arith.constant 0 : i32
    %c0_i32_1 = arith.constant 0 : i32
    return %c0_i32, %c0_i32_0 : i32, i32
  }
  func.func @transform_4(%arg0: i32) -> (i32, i32) {
    %c0_i32 = arith.constant 0 : i32
    %c0_i32_0 = arith.constant 0 : i32
    %c0_i32_1 = arith.constant 0 : i32
    return %c0_i32, %c0_i32_0 : i32, i32
  }
  func.func @transform_5(%arg0: i32) -> (i32, i32) {
    %c0_i32 = arith.constant 0 : i32
    %c0_i32_0 = arith.constant 0 : i32
    %c0_i32_1 = arith.constant 0 : i32
    return %c0_i32, %c0_i32_0 : i32, i32
  }
  func.func @transform_6(%arg0: i32) -> (i32, i32, i32) {
    %c0_i32 = arith.constant 0 : i32
    %c0_i32_0 = arith.constant 0 : i32
    %c0_i32_1 = arith.constant 0 : i32
    return %arg0, %c0_i32, %c0_i32_0 : i32, i32, i32
  }
}

</mosaic_0001>

<llo_original>
// kernel: tpu_custom_call.1
$region0: #{tpu_custom_call.1}
  #allocation0 [shape = 'u32[]', space=smem, size = 0x4, offset = 0x4, fixed_abs, tag = 'smem constant byte address 0x4 - core index']
  #allocation1 [shape = 'u32[144,128]{1,0:T(1,128)}', space=vmem, size = 0x12000, scoped, tag = 'internal scratch']
  #allocation2 [shape = 'f32[2,16,32]{2,1,0:T(8,128)}', space=vmem, size = 0x4000, scoped, tag = 'scratch operand']
  %s0 = inlined_call_operand.vmem [shape: bf16[2,16,64], index: 0, kind: input, shape index: {}]
  %s1 = inlined_call_operand.vmem [shape: bf16[64,32], index: 1, kind: input, shape index: {}]
  %s2 = inlined_call_operand.vmem [shape: bf16[32,96], index: 2, kind: input, shape index: {}]
  %s3 = inlined_call_operand.vmem [shape: f32[1,96], index: 3, kind: input, shape index: {}]
  %s4 = inlined_call_operand.vmem [shape: bf16[32,32], index: 4, kind: input, shape index: {}]
  %s5 = inlined_call_operand.vmem [shape: f32[8,32], index: 5, kind: input, shape index: {}]
  %s6 = inlined_call_operand.hbm [shape: f32[2,1,16], index: 6, kind: output, shape index: {}]
  %s7 = sld [smem:[#allocation0]]
  $region34: #{tpu_custom_call.1} parent=0
    _
  %s9 = ssub.s32 1, %s7
  %s10 = scalar_select 0, %s9, %s7
  $region1: #{tpu_custom_call.1} parent=0
    #allocation3 [shape = 'u8[1024]{0}', space=vmem, size = 0x400, scoped, tag = 'output window, operand 0, single buffered']
    #allocation4 [shape = 's32[1]{0}', space=sflag, size = 0x4, scoped, tag = 'scoped memory for tpu_custom_call.1']
    %11 = vsyncpa [#allocation4], 0
    // Predicated region
    $region2: #{tpu_custom_call.1} parent=1 // pred_check
      _
    $region3: #{tpu_custom_call.1} parent=1 // pred_check_branch
      %13 = sbr.rel (0) target = $region5
    $region4: #{tpu_custom_call.1} parent=1 // pred_region
      _
    $region5: #{tpu_custom_call.1} parent=1 // pred_fallthru
      _
    // Predicated region
    $region6: #{tpu_custom_call.1} parent=1 // pred_check
      _
    $region7: #{tpu_custom_call.1} parent=1 // pred_check_branch
      %15 = sbr.rel (0) target = $region9
    $region8: #{tpu_custom_call.1} parent=1 // pred_region
      _
    $region9: #{tpu_custom_call.1} parent=1 // pred_fallthru
      _
    // Predicated region
    $region10: #{tpu_custom_call.1} parent=1 // pred_check
      _
    $region11: #{tpu_custom_call.1} parent=1 // pred_check_branch
      %17 = sbr.rel (0) target = $region13
    $region12: #{tpu_custom_call.1} parent=1 // pred_region
      _
    $region13: #{tpu_custom_call.1} parent=1 // pred_fallthru
      _
    // Predicated region
    $region14: #{tpu_custom_call.1} parent=1 // pred_check
      _
    $region15: #{tpu_custom_call.1} parent=1 // pred_check_branch
      %19 = sbr.rel (0) target = $region17
    $region16: #{tpu_custom_call.1} parent=1 // pred_region
      _
    $region17: #{tpu_custom_call.1} parent=1 // pred_fallthru
      _
    // Predicated region
    $region18: #{tpu_custom_call.1} parent=1 // pred_check
      _
    $region19: #{tpu_custom_call.1} parent=1 // pred_check_branch
      %21 = sbr.rel (0) target = $region21
    $region20: #{tpu_custom_call.1} parent=1 // pred_region
      _
    $region21: #{tpu_custom_call.1} parent=1 // pred_fallthru
      _
    // Predicated region
    $region22: #{tpu_custom_call.1} parent=1 // pred_check
      _
    $region23: #{tpu_custom_call.1} parent=1 // pred_check_branch
      %23 = sbr.rel (0) target = $region25
    $region24: #{tpu_custom_call.1} parent=1 // pred_region
      _
    $region25: #{tpu_custom_call.1} parent=1 // pred_fallthru
      _
    %v25 = vld [vmem:[%s0] sm:$0xf]
    %v26 = vld [vmem:[%s0 + $0x4] sm:$0xf]
    %v27 = vld [vmem:[%s0 + $0x8] sm:$0xf]
    %v28 = vld [vmem:[%s0 + $0xc] sm:$0xf]
    %v29 = vld [vmem:[%s1] sm:$0xf]
    %v30 = vld [vmem:[%s1 + $0x4] sm:$0xf]
    %v31 = vld [vmem:[%s1 + $0x8] sm:$0xf]
    %v32 = vld [vmem:[%s1 + $0xc] sm:$0xf]
    %v33 = vld [vmem:[%s1 + $0x10] sm:$0xf]
    %v34 = vld [vmem:[%s1 + $0x14] sm:$0xf]
    %v35 = vld [vmem:[%s1 + $0x18] sm:$0xf]
    %v36 = vld [vmem:[%s1 + $0x1c] sm:$0xf]
    %v37 = vld [vmem:[%s5] sm:$0x1]
    %v38 = vlaneseq
    %v39 = vshrl.u32 %v38, 7
    %v40 = vsub.s32 0, %v39
    %v41 = vrot.slane %v37, %v40
    %v46 = vunpack.c.l.b16 %v25
    %v47 = vunpack.c.l.b16 %v26
    %v48 = vunpack.c.l.b16 %v27
    %v49 = vunpack.c.l.b16 %v28
    %v50 = vpack.c.b16 %v47, %v46
    %v51 = vpack.c.b16 %v49, %v48
    %v60 = vunpack.c.l.b16 %v29
    %v61 = vunpack.c.l.b16 %v30
    %v62 = vunpack.c.l.b16 %v31
    %v63 = vunpack.c.l.b16 %v32
    %v64 = vunpack.c.l.b16 %v33
    %v65 = vunpack.c.l.b16 %v34
    %v66 = vunpack.c.l.b16 %v35
    %v67 = vunpack.c.l.b16 %v36
    %v68 = vpack.c.b16 %v61, %v60
    %v69 = vpack.c.b16 %v63, %v62
    %v70 = vpack.c.b16 %v65, %v64
    %v71 = vpack.c.b16 %v67, %v66
    %vm76 = vcmask 523264
    %v78 = vsel %vm76, %v50, 0
    %v81 = vsel %vm76, %v51, 0
    %83 = vmatprep.subr.bf16.mxu0 0
    %84 = vmatpush1.bf16.msra.mxu0 %v68
    %85 = vmatprep.subr.bf16.mxu0 0
    %86 = vmatpush1.bf16.msra.mxu0 %v69
    %87 = vmatprep.subr.bf16.mxu0 0
    %88 = vmatpush1.bf16.msra.mxu0 %v70
    %89 = vmatprep.subr.bf16.mxu0 0
    %90 = vmatpush1.bf16.msra.mxu0 %v71
    %91 = vmatprep.subr.bf16.mxu0 0
    %92 = vmatpush1.bf16.msra.mxu0 0
    %93 = vmatprep.subr.bf16.mxu0 0
    %94 = vmatpush1.bf16.msra.mxu0 0
    %95 = vmatprep.subr.bf16.mxu0 0
    %96 = vmatpush1.bf16.msra.mxu0 0
    %97 = vmatprep.subr.bf16.mxu0 0
    %98 = vmatpush1.bf16.msra.mxu0 0
    %99 = vmatprep.subr.bf16.mxu0 0
    %100 = vmatpush1.bf16.msra.mxu0 0
    %101 = vmatprep.subr.bf16.mxu0 0
    %102 = vmatpush1.bf16.msra.mxu0 0
    %103 = vmatprep.subr.bf16.mxu0 0
    %104 = vmatpush1.bf16.msra.mxu0 0
    %105 = vmatprep.subr.bf16.mxu0 0
    %106 = vmatpush1.bf16.msra.mxu0 0
    %107 = vmatprep.subr.bf16.mxu0 0
    %108 = vmatpush1.bf16.msra.mxu0 0
    %109 = vmatprep.subr.bf16.mxu0 0
    %110 = vmatpush1.bf16.msra.mxu0 0
    %111 = vmatprep.subr.bf16.mxu0 0
    %112 = vmatpush1.bf16.msra.mxu0 0
    %113 = vmatprep.subr.bf16.mxu0 0
    %114 = vmatpush1.bf16.msra.mxu0 0
    %115 = vmatprep.mubr.bf16.mxu0 0
    %116 = vmatmul.mubr.bf16.gmra.mrb[0].mxu0 %v78
    %v117 = vpop.f32.mrb[0].mxu0
    %v118 = vadd.f32 %v41, %v117
    %v119 = vpop.f32.mrb[0].mxu0
    %v120 = vpop.f32.mrb[0].mxu0
    %v121 = vadd.f32 %v41, %v120
    %v122 = vpop.f32.mrb[0].mxu0
    %123 = vmatprep.mubr.bf16.mxu0 0
    %124 = vmatmul.mubr.bf16.gmra.mrb[0].mxu0 %v81
    %v125 = vpop.f32.mrb[0].mxu0
    %v126 = vadd.f32 %v41, %v125
    %v127 = vpop.f32.mrb[0].mxu0
    %v128 = vpop.f32.mrb[0].mxu0
    %v129 = vadd.f32 %v41, %v128
    %v130 = vpop.f32.mrb[0].mxu0
    %131 = vdwg.mxu0
    %v132 = vpack.c.bf16 %v121, %v118
    %v133 = vpack.c.bf16 %v129, %v126
    %v134 = vld [vmem:[%s2] sm:$0xf]
    %v135 = vld [vmem:[%s2 + $0x4] sm:$0xf]
    %v136 = vld [vmem:[%s2 + $0x8] sm:$0xf]
    %v137 = vld [vmem:[%s2 + $0xc] sm:$0xf]
    %v138 = vld [vmem:[%s3] sm:$0x1]
    %v140 = vlaneseq
    %v141 = vshrl.u32 %v140, 7
    %v142 = vsub.s32 0, %v141
    %v143 = vrot.slane %v138, %v142
    %v149 = vunpack.c.l.b16 %v134
    %v150 = vunpack.c.l.b16 %v135
    %v151 = vunpack.c.l.b16 %v136
    %v152 = vunpack.c.l.b16 %v137
    %v153 = vpack.c.b16 %v150, %v149
    %v154 = vpack.c.b16 %v152, %v151
    %vm157 = vcmask 261120
    %v159 = vsel %vm157, %v132, 0
    %v162 = vsel %vm157, %v133, 0
    %164 = vmatprep.subr.bf16.mxu0 0
    %165 = vmatpush1.bf16.msra.mxu0 %v153
    %166 = vmatprep.subr.bf16.mxu0 0
    %167 = vmatpush1.bf16.msra.mxu0 %v154
    %168 = vmatprep.subr.bf16.mxu0 0
    %169 = vmatpush1.bf16.msra.mxu0 0
    %170 = vmatprep.subr.bf16.mxu0 0
    %171 = vmatpush1.bf16.msra.mxu0 0
    %172 = vmatprep.subr.bf16.mxu0 0
    %173 = vmatpush1.bf16.msra.mxu0 0
    %174 = vmatprep.subr.bf16.mxu0 0
    %175 = vmatpush1.bf16.msra.mxu0 0
    %176 = vmatprep.subr.bf16.mxu0 0
    %177 = vmatpush1.bf16.msra.mxu0 0
    %178 = vmatprep.subr.bf16.mxu0 0
    %179 = vmatpush1.bf16.msra.mxu0 0
    %180 = vmatprep.subr.bf16.mxu0 0
    %181 = vmatpush1.bf16.msra.mxu0 0
    %182 = vmatprep.subr.bf16.mxu0 0
    %183 = vmatpush1.bf16.msra.mxu0 0
    %184 = vmatprep.subr.bf16.mxu0 0
    %185 = vmatpush1.bf16.msra.mxu0 0
    %186 = vmatprep.subr.bf16.mxu0 0
    %187 = vmatpush1.bf16.msra.mxu0 0
    %188 = vmatprep.subr.bf16.mxu0 0
    %189 = vmatpush1.bf16.msra.mxu0 0
    %190 = vmatprep.subr.bf16.mxu0 0
    %191 = vmatpush1.bf16.msra.mxu0 0
    %192 = vmatprep.subr.bf16.mxu0 0
    %193 = vmatpush1.bf16.msra.mxu0 0
    %194 = vmatprep.subr.bf16.mxu0 0
    %195 = vmatpush1.bf16.msra.mxu0 0
    %196 = vmatprep.mubr.bf16.mxu0 0
    %197 = vmatmul.mubr.bf16.gmra.mrb[0].mxu0 %v159
    %v198 = vpop.f32.mrb[0].mxu0
    %v199 = vadd.f32 %v143, %v198
    %v200 = vpop.f32.mrb[0].mxu0
    %v201 = vpop.f32.mrb[0].mxu0
    %v202 = vadd.f32 %v143, %v201
    %v203 = vpop.f32.mrb[0].mxu0
    %204 = vmatprep.mubr.bf16.mxu0 0
    %205 = vmatmul.mubr.bf16.gmra.mrb[0].mxu0 %v162
    %v206 = vpop.f32.mrb[0].mxu0
    %v207 = vadd.f32 %v143, %v206
    %v208 = vpop.f32.mrb[0].mxu0
    %v209 = vpop.f32.mrb[0].mxu0
    %v210 = vadd.f32 %v143, %v209
    %v211 = vpop.f32.mrb[0].mxu0
    %212 = vdwg.mxu0
    %v213 = vpack.c.bf16 %v202, %v199
    %v214 = vpack.c.bf16 %v210, %v207
    %216 = vrot.lane.b32.xlu0 %v213, 96
    %v217 = vpop.permute.xlu0 %216
    %vm218 = vcmask 64512
    %v220 = vsel %vm218, %v213, 0
    %v223 = vsel %vm218, %v217, 0
    %225 = vmatprep.subr.bf16.mxu0 0
    %226 = vmatpush1.bf16.xpose.msra.mxu0 %v223
    %227 = vmatprep.subr.bf16.mxu0 0
    %228 = vmatpush1.bf16.xpose.msra.mxu0 0
    %229 = vmatprep.subr.bf16.mxu0 0
    %230 = vmatpush1.bf16.xpose.msra.mxu0 0
    %231 = vmatprep.subr.bf16.mxu0 0
    %232 = vmatpush1.bf16.xpose.msra.mxu0 0
    %233 = vmatprep.subr.bf16.mxu0 0
    %234 = vmatpush1.bf16.xpose.msra.mxu0 0
    %235 = vmatprep.subr.bf16.mxu0 0
    %236 = vmatpush1.bf16.xpose.msra.mxu0 0
    %237 = vmatprep.subr.bf16.mxu0 0
    %238 = vmatpush1.bf16.xpose.msra.mxu0 0
    %239 = vmatprep.subr.bf16.mxu0 0
    %240 = vmatpush1.bf16.xpose.msra.mxu0 0
    %241 = vmatprep.subr.bf16.mxu0 0
    %242 = vmatpush1.bf16.xpose.msra.mxu0 0
    %243 = vmatprep.subr.bf16.mxu0 0
    %244 = vmatpush1.bf16.xpose.msra.mxu0 0
    %245 = vmatprep.subr.bf16.mxu0 0
    %246 = vmatpush1.bf16.xpose.msra.mxu0 0
    %247 = vmatprep.subr.bf16.mxu0 0
    %248 = vmatpush1.bf16.xpose.msra.mxu0 0
    %249 = vmatprep.subr.bf16.mxu0 0
    %250 = vmatpush1.bf16.xpose.msra.mxu0 0
    %251 = vmatprep.subr.bf16.mxu0 0
    %252 = vmatpush1.bf16.xpose.msra.mxu0 0
    %253 = vmatprep.subr.bf16.mxu0 0
    %254 = vmatpush1.bf16.xpose.msra.mxu0 0
    %255 = vmatprep.subr.bf16.mxu0 0
    %256 = vmatpush1.bf16.xpose.msra.mxu0 0
    %257 = vmatprep.mubr.bf16.mxu0 0
    %258 = vmatmul.mubr.bf16.gmra.mrb[0].mxu0 %v220
    %v259 = vpop.f32.mrb[0].mxu0
    %v260 = vadd.f32 0.0, %v259
    %v261 = vpop.f32.mrb[0].mxu0
    %v262 = vpop.f32.mrb[0].mxu0
    %v263 = vadd.f32 0.0, %v262
    %v264 = vpop.f32.mrb[0].mxu0
    %265 = vdwg.mxu0
    %267 = vrot.lane.b32.xlu0 %v214, 96
    %v268 = vpop.permute.xlu0 %267
    %v270 = vsel %vm218, %v214, 0
    %v273 = vsel %vm218, %v268, 0
    %275 = vmatprep.subr.bf16.mxu0 0
    %276 = vmatpush1.bf16.xpose.msra.mxu0 %v273
    %277 = vmatprep.subr.bf16.mxu0 0
    %278 = vmatpush1.bf16.xpose.msra.mxu0 0
    %279 = vmatprep.subr.bf16.mxu0 0
    %280 = vmatpush1.bf16.xpose.msra.mxu0 0
    %281 = vmatprep.subr.bf16.mxu0 0
    %282 = vmatpush1.bf16.xpose.msra.mxu0 0
    %283 = vmatprep.subr.bf16.mxu0 0
    %284 = vmatpush1.bf16.xpose.msra.mxu0 0
    %285 = vmatprep.subr.bf16.mxu0 0
    %286 = vmatpush1.bf16.xpose.msra.mxu0 0
    %287 = vmatprep.subr.bf16.mxu0 0
    %288 = vmatpush1.bf16.xpose.msra.mxu0 0
    %289 = vmatprep.subr.bf16.mxu0 0
    %290 = vmatpush1.bf16.xpose.msra.mxu0 0
    %291 = vmatprep.subr.bf16.mxu0 0
    %292 = vmatpush1.bf16.xpose.msra.mxu0 0
    %293 = vmatprep.subr.bf16.mxu0 0
    %294 = vmatpush1.bf16.xpose.msra.mxu0 0
    %295 = vmatprep.subr.bf16.mxu0 0
    %296 = vmatpush1.bf16.xpose.msra.mxu0 0
    %297 = vmatprep.subr.bf16.mxu0 0
    %298 = vmatpush1.bf16.xpose.msra.mxu0 0
    %299 = vmatprep.subr.bf16.mxu0 0
    %300 = vmatpush1.bf16.xpose.msra.mxu0 0
    %301 = vmatprep.subr.bf16.mxu0 0
    %302 = vmatpush1.bf16.xpose.msra.mxu0 0
    %303 = vmatprep.subr.bf16.mxu0 0
    %304 = vmatpush1.bf16.xpose.msra.mxu0 0
    %305 = vmatprep.subr.bf16.mxu0 0
    %306 = vmatpush1.bf16.xpose.msra.mxu0 0
    %307 = vmatprep.mubr.bf16.mxu0 0
    %308 = vmatmul.mubr.bf16.gmra.mrb[0].mxu0 %v270
    %v309 = vpop.f32.mrb[0].mxu0
    %v310 = vadd.f32 0.0, %v309
    %v311 = vpop.f32.mrb[0].mxu0
    %v312 = vpop.f32.mrb[0].mxu0
    %v313 = vadd.f32 0.0, %v312
    %v314 = vpop.f32.mrb[0].mxu0
    %315 = vdwg.mxu0
    %vm316 = vcmask 130048
    %v317 = vsel %vm316, %v260, -inf
    %318 = vmax.xlane.f32.xlu0 %v317
    %v319 = vpop.xlane.xlu0 %318
    %v320 = vsel %vm316, %v263, -inf
    %321 = vmax.xlane.f32.xlu0 %v320
    %v322 = vpop.xlane.xlu0 %321
    %v323 = vsel %vm316, %v310, -inf
    %324 = vmax.xlane.f32.xlu0 %v323
    %v325 = vpop.xlane.xlu0 %324
    %v326 = vsel %vm316, %v313, -inf
    %327 = vmax.xlane.f32.xlu0 %v326
    %v328 = vpop.xlane.xlu0 %327
    %v329 = vsub.f32 %v260, %v319
    %v330 = vsub.f32 %v263, %v322
    %v331 = vsub.f32 %v310, %v325
    %v332 = vsub.f32 %v313, %v328
    %v333 = vmul.f32 %v329, 1.442695
    %v334 = vpow.pop %v333
    %v335 = vmul.f32 %v330, 1.442695
    %v336 = vpow.pop %v335
    %v337 = vmul.f32 %v331, 1.442695
    %v338 = vpow.pop %v337
    %v339 = vmul.f32 %v332, 1.442695
    %v340 = vpow.pop %v339
    %v341 = vsel %vm316, %v334, 0.0
    %342 = vadd.xlane.f32.xlu0 %v341
    %v343 = vpop.xlane.xlu0 %342
    %v344 = vsel %vm316, %v336, 0.0
    %345 = vadd.xlane.f32.xlu0 %v344
    %v346 = vpop.xlane.xlu0 %345
    %v347 = vsel %vm316, %v338, 0.0
    %348 = vadd.xlane.f32.xlu0 %v347
    %v349 = vpop.xlane.xlu0 %348
    %v350 = vsel %vm316, %v340, 0.0
    %351 = vadd.xlane.f32.xlu0 %v350
    %v352 = vpop.xlane.xlu0 %351
    %v353 = vrcp.pop %v343
    %v354 = vrcp.pop %v346
    %v355 = vrcp.pop %v349
    %v356 = vrcp.pop %v352
    %v357 = vmul.f32 %v334, %v353
    %v358 = vmul.f32 %v336, %v354
    %v359 = vmul.f32 %v338, %v355
    %v360 = vmul.f32 %v340, %v356
    %v361 = vpack.c.bf16 %v358, %v357
    %v362 = vpack.c.bf16 %v360, %v359
    %363 = vrot.lane.b32.xlu0 %v213, 64
    %v364 = vpop.permute.xlu0 %363
    %v367 = vsel %vm316, %v361, 0
    %369 = vmatprep.subr.bf16.mxu0 0
    %370 = vmatpush1.bf16.msra.mxu0 %v364
    %371 = vmatprep.subr.bf16.mxu0 0
    %372 = vmatpush1.bf16.msra.mxu0 0
    %373 = vmatprep.subr.bf16.mxu0 0
    %374 = vmatpush1.bf16.msra.mxu0 0
    %375 = vmatprep.subr.bf16.mxu0 0
    %376 = vmatpush1.bf16.msra.mxu0 0
    %377 = vmatprep.subr.bf16.mxu0 0
    %378 = vmatpush1.bf16.msra.mxu0 0
    %379 = vmatprep.subr.bf16.mxu0 0
    %380 = vmatpush1.bf16.msra.mxu0 0
    %381 = vmatprep.subr.bf16.mxu0 0
    %382 = vmatpush1.bf16.msra.mxu0 0
    %383 = vmatprep.subr.bf16.mxu0 0
    %384 = vmatpush1.bf16.msra.mxu0 0
    %385 = vmatprep.subr.bf16.mxu0 0
    %386 = vmatpush1.bf16.msra.mxu0 0
    %387 = vmatprep.subr.bf16.mxu0 0
    %388 = vmatpush1.bf16.msra.mxu0 0
    %389 = vmatprep.subr.bf16.mxu0 0
    %390 = vmatpush1.bf16.msra.mxu0 0
    %391 = vmatprep.subr.bf16.mxu0 0
    %392 = vmatpush1.bf16.msra.mxu0 0
    %393 = vmatprep.subr.bf16.mxu0 0
    %394 = vmatpush1.bf16.msra.mxu0 0
    %395 = vmatprep.subr.bf16.mxu0 0
    %396 = vmatpush1.bf16.msra.mxu0 0
    %397 = vmatprep.subr.bf16.mxu0 0
    %398 = vmatpush1.bf16.msra.mxu0 0
    %399 = vmatprep.subr.bf16.mxu0 0
    %400 = vmatpush1.bf16.msra.mxu0 0
    %401 = vmatprep.mubr.bf16.mxu0 0
    %402 = vmatmul.mubr.bf16.gmra.mrb[0].mxu0 %v367
    %v403 = vpop.f32.mrb[0].mxu0
    %v404 = vadd.f32 0.0, %v403
    %v405 = vpop.f32.mrb[0].mxu0
    %v406 = vpop.f32.mrb[0].mxu0
    %v407 = vadd.f32 0.0, %v406
    %v408 = vpop.f32.mrb[0].mxu0
    %409 = vdwg.mxu0
    %410 = vrot.lane.b32.xlu0 %v214, 64
    %v411 = vpop.permute.xlu0 %410
    %v414 = vsel %vm316, %v362, 0
    %416 = vmatprep.subr.bf16.mxu0 0
    %417 = vmatpush1.bf16.msra.mxu0 %v411
    %418 = vmatprep.subr.bf16.mxu0 0
    %419 = vmatpush1.bf16.msra.mxu0 0
    %420 = vmatprep.subr.bf16.mxu0 0
    %421 = vmatpush1.bf16.msra.mxu0 0
    %422 = vmatprep.subr.bf16.mxu0 0
    %423 = vmatpush1.bf16.msra.mxu0 0
    %424 = vmatprep.subr.bf16.mxu0 0
    %425 = vmatpush1.bf16.msra.mxu0 0
    %426 = vmatprep.subr.bf16.mxu0 0
    %427 = vmatpush1.bf16.msra.mxu0 0
    %428 = vmatprep.subr.bf16.mxu0 0
    %429 = vmatpush1.bf16.msra.mxu0 0
    %430 = vmatprep.subr.bf16.mxu0 0
    %431 = vmatpush1.bf16.msra.mxu0 0
    %432 = vmatprep.subr.bf16.mxu0 0
    %433 = vmatpush1.bf16.msra.mxu0 0
    %434 = vmatprep.subr.bf16.mxu0 0
    %435 = vmatpush1.bf16.msra.mxu0 0
    %436 = vmatprep.subr.bf16.mxu0 0
    %437 = vmatpush1.bf16.msra.mxu0 0
    %438 = vmatprep.subr.bf16.mxu0 0
    %439 = vmatpush1.bf16.msra.mxu0 0
    %440 = vmatprep.subr.bf16.mxu0 0
    %441 = vmatpush1.bf16.msra.mxu0 0
    %442 = vmatprep.subr.bf16.mxu0 0
    %443 = vmatpush1.bf16.msra.mxu0 0
    %444 = vmatprep.subr.bf16.mxu0 0
    %445 = vmatpush1.bf16.msra.mxu0 0
    %446 = vmatprep.subr.bf16.mxu0 0
    %447 = vmatpush1.bf16.msra.mxu0 0
    %448 = vmatprep.mubr.bf16.mxu0 0
    %449 = vmatmul.mubr.bf16.gmra.mrb[0].mxu0 %v414
    %v450 = vpop.f32.mrb[0].mxu0
    %v451 = vadd.f32 0.0, %v450
    %v452 = vpop.f32.mrb[0].mxu0
    %v453 = vpop.f32.mrb[0].mxu0
    %v454 = vadd.f32 0.0, %v453
    %v455 = vpop.f32.mrb[0].mxu0
    %456 = vdwg.mxu0
    %457 = vst.msk [vmem:[#allocation2] sm:$0xff] %vm218, %v404
    %458 = vst.msk [vmem:[#allocation2 + $0x8] sm:$0xff] %vm218, %v407
    %459 = vst.msk [vmem:[#allocation2 + $0x10] sm:$0xff] %vm218, %v451
    %460 = vst.msk [vmem:[#allocation2 + $0x18] sm:$0xff] %vm218, %v454
    %461 = vrot.lane.b32.xlu0 %v213, 120
    %v462 = vpop.permute.xlu0 %461
    %463 = vrot.lane.b32.xlu0 %v213, 88
    %v464 = vpop.permute.xlu0 %463
    %v466 = vsel %vm218, %v462, 0
    %v469 = vsel %vm218, %v464, 0
    %471 = vmatprep.subr.bf16.mxu0 0
    %472 = vmatpush1.bf16.xpose.msra.mxu0 %v469
    %473 = vmatprep.subr.bf16.mxu0 0
    %474 = vmatpush1.bf16.xpose.msra.mxu0 0
    %475 = vmatprep.subr.bf16.mxu0 0
    %476 = vmatpush1.bf16.xpose.msra.mxu0 0
    %477 = vmatprep.subr.bf16.mxu0 0
    %478 = vmatpush1.bf16.xpose.msra.mxu0 0
    %479 = vmatprep.subr.bf16.mxu0 0
    %480 = vmatpush1.bf16.xpose.msra.mxu0 0
    %481 = vmatprep.subr.bf16.mxu0 0
    %482 = vmatpush1.bf16.xpose.msra.mxu0 0
    %483 = vmatprep.subr.bf16.mxu0 0
    %484 = vmatpush1.bf16.xpose.msra.mxu0 0
    %485 = vmatprep.subr.bf16.mxu0 0
    %486 = vmatpush1.bf16.xpose.msra.mxu0 0
    %487 = vmatprep.subr.bf16.mxu0 0
    %488 = vmatpush1.bf16.xpose.msra.mxu0 0
    %489 = vmatprep.subr.bf16.mxu0 0
    %490 = vmatpush1.bf16.xpose.msra.mxu0 0
    %491 = vmatprep.subr.bf16.mxu0 0
    %492 = vmatpush1.bf16.xpose.msra.mxu0 0
    %493 = vmatprep.subr.bf16.mxu0 0
    %494 = vmatpush1.bf16.xpose.msra.mxu0 0
    %495 = vmatprep.subr.bf16.mxu0 0
    %496 = vmatpush1.bf16.xpose.msra.mxu0 0
    %497 = vmatprep.subr.bf16.mxu0 0
    %498 = vmatpush1.bf16.xpose.msra.mxu0 0
    %499 = vmatprep.subr.bf16.mxu0 0
    %500 = vmatpush1.bf16.xpose.msra.mxu0 0
    %501 = vmatprep.subr.bf16.mxu0 0
    %502 = vmatpush1.bf16.xpose.msra.mxu0 0
    %503 = vmatprep.mubr.bf16.mxu0 0
    %504 = vmatmul.mubr.bf16.gmra.mrb[0].mxu0 %v466
    %v505 = vpop.f32.mrb[0].mxu0
    %v506 = vadd.f32 0.0, %v505
    %v507 = vpop.f32.mrb[0].mxu0
    %v508 = vpop.f32.mrb[0].mxu0
    %v509 = vadd.f32 0.0, %v508
    %v510 = vpop.f32.mrb[0].mxu0
    %511 = vdwg.mxu0
    %512 = vrot.lane.b32.xlu0 %v214, 120
    %v513 = vpop.permute.xlu0 %512
    %514 = vrot.lane.b32.xlu0 %v214, 88
    %v515 = vpop.permute.xlu0 %514
    %v517 = vsel %vm218, %v513, 0
    %v520 = vsel %vm218, %v515, 0
    %522 = vmatprep.subr.bf16.mxu0 0
    %523 = vmatpush1.bf16.xpose.msra.mxu0 %v520
    %524 = vmatprep.subr.bf16.mxu0 0
    %525 = vmatpush1.bf16.xpose.msra.mxu0 0
    %526 = vmatprep.subr.bf16.mxu0 0
    %527 = vmatpush1.bf16.xpose.msra.mxu0 0
    %528 = vmatprep.subr.bf16.mxu0 0
    %529 = vmatpush1.bf16.xpose.msra.mxu0 0
    %530 = vmatprep.subr.bf16.mxu0 0
    %531 = vmatpush1.bf16.xpose.msra.mxu0 0
    %532 = vmatprep.subr.bf16.mxu0 0
    %533 = vmatpush1.bf16.xpose.msra.mxu0 0
    %534 = vmatprep.subr.bf16.mxu0 0
    %535 = vmatpush1.bf16.xpose.msra.mxu0 0
    %536 = vmatprep.subr.bf16.mxu0 0
    %537 = vmatpush1.bf16.xpose.msra.mxu0 0
    %538 = vmatprep.subr.bf16.mxu0 0
    %539 = vmatpush1.bf16.xpose.msra.mxu0 0
    %540 = vmatprep.subr.bf16.mxu0 0
    %541 = vmatpush1.bf16.xpose.msra.mxu0 0
    %542 = vmatprep.subr.bf16.mxu0 0
    %543 = vmatpush1.bf16.xpose.msra.mxu0 0
    %544 = vmatprep.subr.bf16.mxu0 0
    %545 = vmatpush1.bf16.xpose.msra.mxu0 0
    %546 = vmatprep.subr.bf16.mxu0 0
    %547 = vmatpush1.bf16.xpose.msra.mxu0 0
    %548 = vmatprep.subr.bf16.mxu0 0
    %549 = vmatpush1.bf16.xpose.msra.mxu0 0
    %550 = vmatprep.subr.bf16.mxu0 0
    %551 = vmatpush1.bf16.xpose.msra.mxu0 0
    %552 = vmatprep.subr.bf16.mxu0 0
    %553 = vmatpush1.bf16.xpose.msra.mxu0 0
    %554 = vmatprep.mubr.bf16.mxu0 0
    %555 = vmatmul.mubr.bf16.gmra.mrb[0].mxu0 %v517
    %v556 = vpop.f32.mrb[0].mxu0
    %v557 = vadd.f32 0.0, %v556
    %v558 = vpop.f32.mrb[0].mxu0
    %v559 = vpop.f32.mrb[0].mxu0
    %v560 = vadd.f32 0.0, %v559
    %v561 = vpop.f32.mrb[0].mxu0
    %562 = vdwg.mxu0
    %v563 = vsel %vm316, %v506, -inf
    %564 = vmax.xlane.f32.xlu0 %v563
    %v565 = vpop.xlane.xlu0 %564
    %v566 = vsel %vm316, %v509, -inf
    %567 = vmax.xlane.f32.xlu0 %v566
    %v568 = vpop.xlane.xlu0 %567
    %v569 = vsel %vm316, %v557, -inf
    %570 = vmax.xlane.f32.xlu0 %v569
    %v571 = vpop.xlane.xlu0 %570
    %v572 = vsel %vm316, %v560, -inf
    %573 = vmax.xlane.f32.xlu0 %v572
    %v574 = vpop.xlane.xlu0 %573
    %v575 = vsub.f32 %v506, %v565
    %v576 = vsub.f32 %v509, %v568
    %v577 = vsub.f32 %v557, %v571
    %v578 = vsub.f32 %v560, %v574
    %v579 = vmul.f32 %v575, 1.442695
    %v580 = vpow.pop %v579
    %v581 = vmul.f32 %v576, 1.442695
    %v582 = vpow.pop %v581
    %v583 = vmul.f32 %v577, 1.442695
    %v584 = vpow.pop %v583
    %v585 = vmul.f32 %v578, 1.442695
    %v586 = vpow.pop %v585
    %v587 = vsel %vm316, %v580, 0.0
    %588 = vadd.xlane.f32.xlu0 %v587
    %v589 = vpop.xlane.xlu0 %588
    %v590 = vsel %vm316, %v582, 0.0
    %591 = vadd.xlane.f32.xlu0 %v590
    %v592 = vpop.xlane.xlu0 %591
    %v593 = vsel %vm316, %v584, 0.0
    %594 = vadd.xlane.f32.xlu0 %v593
    %v595 = vpop.xlane.xlu0 %594
    %v596 = vsel %vm316, %v586, 0.0
    %597 = vadd.xlane.f32.xlu0 %v596
    %v598 = vpop.xlane.xlu0 %597
    %v599 = vrcp.pop %v589
    %v600 = vrcp.pop %v592
    %v601 = vrcp.pop %v595
    %v602 = vrcp.pop %v598
    %v603 = vmul.f32 %v580, %v599
    %v604 = vmul.f32 %v582, %v600
    %v605 = vmul.f32 %v584, %v601
    %v606 = vmul.f32 %v586, %v602
    %v607 = vpack.c.bf16 %v604, %v603
    %v608 = vpack.c.bf16 %v606, %v605
    %609 = vrot.lane.b32.xlu0 %v213, 56
    %v610 = vpop.permute.xlu0 %609
    %v613 = vsel %vm316, %v607, 0
    %615 = vmatprep.subr.bf16.mxu0 0
    %616 = vmatpush1.bf16.msra.mxu0 %v610
    %617 = vmatprep.subr.bf16.mxu0 0
    %618 = vmatpush1.bf16.msra.mxu0 0
    %619 = vmatprep.subr.bf16.mxu0 0
    %620 = vmatpush1.bf16.msra.mxu0 0
    %621 = vmatprep.subr.bf16.mxu0 0
    %622 = vmatpush1.bf16.msra.mxu0 0
    %623 = vmatprep.subr.bf16.mxu0 0
    %624 = vmatpush1.bf16.msra.mxu0 0
    %625 = vmatprep.subr.bf16.mxu0 0
    %626 = vmatpush1.bf16.msra.mxu0 0
    %627 = vmatprep.subr.bf16.mxu0 0
    %628 = vmatpush1.bf16.msra.mxu0 0
    %629 = vmatprep.subr.bf16.mxu0 0
    %630 = vmatpush1.bf16.msra.mxu0 0
    %631 = vmatprep.subr.bf16.mxu0 0
    %632 = vmatpush1.bf16.msra.mxu0 0
    %633 = vmatprep.subr.bf16.mxu0 0
    %634 = vmatpush1.bf16.msra.mxu0 0
    %635 = vmatprep.subr.bf16.mxu0 0
    %636 = vmatpush1.bf16.msra.mxu0 0
    %637 = vmatprep.subr.bf16.mxu0 0
    %638 = vmatpush1.bf16.msra.mxu0 0
    %639 = vmatprep.subr.bf16.mxu0 0
    %640 = vmatpush1.bf16.msra.mxu0 0
    %641 = vmatprep.subr.bf16.mxu0 0
    %642 = vmatpush1.bf16.msra.mxu0 0
    %643 = vmatprep.subr.bf16.mxu0 0
    %644 = vmatpush1.bf16.msra.mxu0 0
    %645 = vmatprep.subr.bf16.mxu0 0
    %646 = vmatpush1.bf16.msra.mxu0 0
    %647 = vmatprep.mubr.bf16.mxu0 0
    %648 = vmatmul.mubr.bf16.gmra.mrb[0].mxu0 %v613
    %v649 = vpop.f32.mrb[0].mxu0
    %v650 = vadd.f32 0.0, %v649
    %v651 = vpop.f32.mrb[0].mxu0
    %v652 = vpop.f32.mrb[0].mxu0
    %v653 = vadd.f32 0.0, %v652
    %v654 = vpop.f32.mrb[0].mxu0
    %655 = vdwg.mxu0
    %656 = vrot.lane.b32.xlu0 %v214, 56
    %v657 = vpop.permute.xlu0 %656
    %v660 = vsel %vm316, %v608, 0
    %662 = vmatprep.subr.bf16.mxu0 0
    %663 = vmatpush1.bf16.msra.mxu0 %v657
    %664 = vmatprep.subr.bf16.mxu0 0
    %665 = vmatpush1.bf16.msra.mxu0 0
    %666 = vmatprep.subr.bf16.mxu0 0
    %667 = vmatpush1.bf16.msra.mxu0 0
    %668 = vmatprep.subr.bf16.mxu0 0
    %669 = vmatpush1.bf16.msra.mxu0 0
    %670 = vmatprep.subr.bf16.mxu0 0
    %671 = vmatpush1.bf16.msra.mxu0 0
    %672 = vmatprep.subr.bf16.mxu0 0
    %673 = vmatpush1.bf16.msra.mxu0 0
    %674 = vmatprep.subr.bf16.mxu0 0
    %675 = vmatpush1.bf16.msra.mxu0 0
    %676 = vmatprep.subr.bf16.mxu0 0
    %677 = vmatpush1.bf16.msra.mxu0 0
    %678 = vmatprep.subr.bf16.mxu0 0
    %679 = vmatpush1.bf16.msra.mxu0 0
    %680 = vmatprep.subr.bf16.mxu0 0
    %681 = vmatpush1.bf16.msra.mxu0 0
    %682 = vmatprep.subr.bf16.mxu0 0
    %683 = vmatpush1.bf16.msra.mxu0 0
    %684 = vmatprep.subr.bf16.mxu0 0
    %685 = vmatpush1.bf16.msra.mxu0 0
    %686 = vmatprep.subr.bf16.mxu0 0
    %687 = vmatpush1.bf16.msra.mxu0 0
    %688 = vmatprep.subr.bf16.mxu0 0
    %689 = vmatpush1.bf16.msra.mxu0 0
    %690 = vmatprep.subr.bf16.mxu0 0
    %691 = vmatpush1.bf16.msra.mxu0 0
    %692 = vmatprep.subr.bf16.mxu0 0
    %693 = vmatpush1.bf16.msra.mxu0 0
    %694 = vmatprep.mubr.bf16.mxu0 0
    %695 = vmatmul.mubr.bf16.gmra.mrb[0].mxu0 %v660
    %v696 = vpop.f32.mrb[0].mxu0
    %v697 = vadd.f32 0.0, %v696
    %v698 = vpop.f32.mrb[0].mxu0
    %v699 = vpop.f32.mrb[0].mxu0
    %v700 = vadd.f32 0.0, %v699
    %v701 = vpop.f32.mrb[0].mxu0
    %702 = vdwg.mxu0
    %707 = vrot.lane.b32.xlu0 %v650, 8
    %v708 = vpop.permute.xlu0 %707
    %709 = vrot.lane.b32.xlu0 %v653, 8
    %v710 = vpop.permute.xlu0 %709
    %711 = vrot.lane.b32.xlu0 %v697, 8
    %v712 = vpop.permute.xlu0 %711
    %713 = vrot.lane.b32.xlu0 %v700, 8
    %v714 = vpop.permute.xlu0 %713
    %vm719 = vcmask 130112
    %720 = vst.msk [vmem:[#allocation2] sm:$0xff] %vm719, %v708
    %721 = vst.msk [vmem:[#allocation2 + $0x8] sm:$0xff] %vm719, %v710
    %722 = vst.msk [vmem:[#allocation2 + $0x10] sm:$0xff] %vm719, %v712
    %723 = vst.msk [vmem:[#allocation2 + $0x18] sm:$0xff] %vm719, %v714
    %724 = vrot.lane.b32.xlu0 %v213, 112
    %v725 = vpop.permute.xlu0 %724
    %726 = vrot.lane.b32.xlu0 %v213, 80
    %v727 = vpop.permute.xlu0 %726
    %v729 = vsel %vm218, %v725, 0
    %v732 = vsel %vm218, %v727, 0
    %734 = vmatprep.subr.bf16.mxu0 0
    %735 = vmatpush1.bf16.xpose.msra.mxu0 %v732
    %736 = vmatprep.subr.bf16.mxu0 0
    %737 = vmatpush1.bf16.xpose.msra.mxu0 0
    %738 = vmatprep.subr.bf16.mxu0 0
    %739 = vmatpush1.bf16.xpose.msra.mxu0 0
    %740 = vmatprep.subr.bf16.mxu0 0
    %741 = vmatpush1.bf16.xpose.msra.mxu0 0
    %742 = vmatprep.subr.bf16.mxu0 0
    %743 = vmatpush1.bf16.xpose.msra.mxu0 0
    %744 = vmatprep.subr.bf16.mxu0 0
    %745 = vmatpush1.bf16.xpose.msra.mxu0 0
    %746 = vmatprep.subr.bf16.mxu0 0
    %747 = vmatpush1.bf16.xpose.msra.mxu0 0
    %748 = vmatprep.subr.bf16.mxu0 0
    %749 = vmatpush1.bf16.xpose.msra.mxu0 0
    %750 = vmatprep.subr.bf16.mxu0 0
    %751 = vmatpush1.bf16.xpose.msra.mxu0 0
    %752 = vmatprep.subr.bf16.mxu0 0
    %753 = vmatpush1.bf16.xpose.msra.mxu0 0
    %754 = vmatprep.subr.bf16.mxu0 0
    %755 = vmatpush1.bf16.xpose.msra.mxu0 0
    %756 = vmatprep.subr.bf16.mxu0 0
    %757 = vmatpush1.bf16.xpose.msra.mxu0 0
    %758 = vmatprep.subr.bf16.mxu0 0
    %759 = vmatpush1.bf16.xpose.msra.mxu0 0
    %760 = vmatprep.subr.bf16.mxu0 0
    %761 = vmatpush1.bf16.xpose.msra.mxu0 0
    %762 = vmatprep.subr.bf16.mxu0 0
    %763 = vmatpush1.bf16.xpose.msra.mxu0 0
    %764 = vmatprep.subr.bf16.mxu0 0
    %765 = vmatpush1.bf16.xpose.msra.mxu0 0
    %766 = vmatprep.mubr.bf16.mxu0 0
    %767 = vmatmul.mubr.bf16.gmra.mrb[0].mxu0 %v729
    %v768 = vpop.f32.mrb[0].mxu0
    %v769 = vadd.f32 0.0, %v768
    %v770 = vpop.f32.mrb[0].mxu0
    %v771 = vpop.f32.mrb[0].mxu0
    %v772 = vadd.f32 0.0, %v771
    %v773 = vpop.f32.mrb[0].mxu0
    %774 = vdwg.mxu0
    %775 = vrot.lane.b32.xlu0 %v214, 112
    %v776 = vpop.permute.xlu0 %775
    %777 = vrot.lane.b32.xlu0 %v214, 80
    %v778 = vpop.permute.xlu0 %777
    %v780 = vsel %vm218, %v776, 0
    %v783 = vsel %vm218, %v778, 0
    %785 = vmatprep.subr.bf16.mxu0 0
    %786 = vmatpush1.bf16.xpose.msra.mxu0 %v783
    %787 = vmatprep.subr.bf16.mxu0 0
    %788 = vmatpush1.bf16.xpose.msra.mxu0 0
    %789 = vmatprep.subr.bf16.mxu0 0
    %790 = vmatpush1.bf16.xpose.msra.mxu0 0
    %791 = vmatprep.subr.bf16.mxu0 0
    %792 = vmatpush1.bf16.xpose.msra.mxu0 0
    %793 = vmatprep.subr.bf16.mxu0 0
    %794 = vmatpush1.bf16.xpose.msra.mxu0 0
    %795 = vmatprep.subr.bf16.mxu0 0
    %796 = vmatpush1.bf16.xpose.msra.mxu0 0
    %797 = vmatprep.subr.bf16.mxu0 0
    %798 = vmatpush1.bf16.xpose.msra.mxu0 0
    %799 = vmatprep.subr.bf16.mxu0 0
    %800 = vmatpush1.bf16.xpose.msra.mxu0 0
    %801 = vmatprep.subr.bf16.mxu0 0
    %802 = vmatpush1.bf16.xpose.msra.mxu0 0
    %803 = vmatprep.subr.bf16.mxu0 0
    %804 = vmatpush1.bf16.xpose.msra.mxu0 0
    %805 = vmatprep.subr.bf16.mxu0 0
    %806 = vmatpush1.bf16.xpose.msra.mxu0 0
    %807 = vmatprep.subr.bf16.mxu0 0
    %808 = vmatpush1.bf16.xpose.msra.mxu0 0
    %809 = vmatprep.subr.bf16.mxu0 0
    %810 = vmatpush1.bf16.xpose.msra.mxu0 0
    %811 = vmatprep.subr.bf16.mxu0 0
    %812 = vmatpush1.bf16.xpose.msra.mxu0 0
    %813 = vmatprep.subr.bf16.mxu0 0
    %814 = vmatpush1.bf16.xpose.msra.mxu0 0
    %815 = vmatprep.subr.bf16.mxu0 0
    %816 = vmatpush1.bf16.xpose.msra.mxu0 0
    %817 = vmatprep.mubr.bf16.mxu0 0
    %818 = vmatmul.mubr.bf16.gmra.mrb[0].mxu0 %v780
    %v819 = vpop.f32.mrb[0].mxu0
    %v820 = vadd.f32 0.0, %v819
    %v821 = vpop.f32.mrb[0].mxu0
    %v822 = vpop.f32.mrb[0].mxu0
    %v823 = vadd.f32 0.0, %v822
    %v824 = vpop.f32.mrb[0].mxu0
    %825 = vdwg.mxu0
    %v826 = vsel %vm316, %v769, -inf
    %827 = vmax.xlane.f32.xlu0 %v826
    %v828 = vpop.xlane.xlu0 %827
    %v829 = vsel %vm316, %v772, -inf
    %830 = vmax.xlane.f32.xlu0 %v829
    %v831 = vpop.xlane.xlu0 %830
    %v832 = vsel %vm316, %v820, -inf
    %833 = vmax.xlane.f32.xlu0 %v832
    %v834 = vpop.xlane.xlu0 %833
    %v835 = vsel %vm316, %v823, -inf
    %836 = vmax.xlane.f32.xlu0 %v835
    %v837 = vpop.xlane.xlu0 %836
    %v838 = vsub.f32 %v769, %v828
    %v839 = vsub.f32 %v772, %v831
    %v840 = vsub.f32 %v820, %v834
    %v841 = vsub.f32 %v823, %v837
    %v842 = vmul.f32 %v838, 1.442695
    %v843 = vpow.pop %v842
    %v844 = vmul.f32 %v839, 1.442695
    %v845 = vpow.pop %v844
    %v846 = vmul.f32 %v840, 1.442695
    %v847 = vpow.pop %v846
    %v848 = vmul.f32 %v841, 1.442695
    %v849 = vpow.pop %v848
    %v850 = vsel %vm316, %v843, 0.0
    %851 = vadd.xlane.f32.xlu0 %v850
    %v852 = vpop.xlane.xlu0 %851
    %v853 = vsel %vm316, %v845, 0.0
    %854 = vadd.xlane.f32.xlu0 %v853
    %v855 = vpop.xlane.xlu0 %854
    %v856 = vsel %vm316, %v847, 0.0
    %857 = vadd.xlane.f32.xlu0 %v856
    %v858 = vpop.xlane.xlu0 %857
    %v859 = vsel %vm316, %v849, 0.0
    %860 = vadd.xlane.f32.xlu0 %v859
    %v861 = vpop.xlane.xlu0 %860
    %v862 = vrcp.pop %v852
    %v863 = vrcp.pop %v855
    %v864 = vrcp.pop %v858
    %v865 = vrcp.pop %v861
    %v866 = vmul.f32 %v843, %v862
    %v867 = vmul.f32 %v845, %v863
    %v868 = vmul.f32 %v847, %v864
    %v869 = vmul.f32 %v849, %v865
    %v870 = vpack.c.bf16 %v867, %v866
    %v871 = vpack.c.bf16 %v869, %v868
    %872 = vrot.lane.b32.xlu0 %v213, 48
    %v873 = vpop.permute.xlu0 %872
    %v876 = vsel %vm316, %v870, 0
    %878 = vmatprep.subr.bf16.mxu0 0
    %879 = vmatpush1.bf16.msra.mxu0 %v873
    %880 = vmatprep.subr.bf16.mxu0 0
    %881 = vmatpush1.bf16.msra.mxu0 0
    %882 = vmatprep.subr.bf16.mxu0 0
    %883 = vmatpush1.bf16.msra.mxu0 0
    %884 = vmatprep.subr.bf16.mxu0 0
    %885 = vmatpush1.bf16.msra.mxu0 0
    %886 = vmatprep.subr.bf16.mxu0 0
    %887 = vmatpush1.bf16.msra.mxu0 0
    %888 = vmatprep.subr.bf16.mxu0 0
    %889 = vmatpush1.bf16.msra.mxu0 0
    %890 = vmatprep.subr.bf16.mxu0 0
    %891 = vmatpush1.bf16.msra.mxu0 0
    %892 = vmatprep.subr.bf16.mxu0 0
    %893 = vmatpush1.bf16.msra.mxu0 0
    %894 = vmatprep.subr.bf16.mxu0 0
    %895 = vmatpush1.bf16.msra.mxu0 0
    %896 = vmatprep.subr.bf16.mxu0 0
    %897 = vmatpush1.bf16.msra.mxu0 0
    %898 = vmatprep.subr.bf16.mxu0 0
    %899 = vmatpush1.bf16.msra.mxu0 0
    %900 = vmatprep.subr.bf16.mxu0 0
    %901 = vmatpush1.bf16.msra.mxu0 0
    %902 = vmatprep.subr.bf16.mxu0 0
    %903 = vmatpush1.bf16.msra.mxu0 0
    %904 = vmatprep.subr.bf16.mxu0 0
    %905 = vmatpush1.bf16.msra.mxu0 0
    %906 = vmatprep.subr.bf16.mxu0 0
    %907 = vmatpush1.bf16.msra.mxu0 0
    %908 = vmatprep.subr.bf16.mxu0 0
    %909 = vmatpush1.bf16.msra.mxu0 0
    %910 = vmatprep.mubr.bf16.mxu0 0
    %911 = vmatmul.mubr.bf16.gmra.mrb[0].mxu0 %v876
    %v912 = vpop.f32.mrb[0].mxu0
    %v913 = vadd.f32 0.0, %v912
    %v914 = vpop.f32.mrb[0].mxu0
    %v915 = vpop.f32.mrb[0].mxu0
    %v916 = vadd.f32 0.0, %v915
    %v917 = vpop.f32.mrb[0].mxu0
    %918 = vdwg.mxu0
    %919 = vrot.lane.b32.xlu0 %v214, 48
    %v920 = vpop.permute.xlu0 %919
    %v923 = vsel %vm316, %v871, 0
    %925 = vmatprep.subr.bf16.mxu0 0
    %926 = vmatpush1.bf16.msra.mxu0 %v920
    %927 = vmatprep.subr.bf16.mxu0 0
    %928 = vmatpush1.bf16.msra.mxu0 0
    %929 = vmatprep.subr.bf16.mxu0 0
    %930 = vmatpush1.bf16.msra.mxu0 0
    %931 = vmatprep.subr.bf16.mxu0 0
    %932 = vmatpush1.bf16.msra.mxu0 0
    %933 = vmatprep.subr.bf16.mxu0 0
    %934 = vmatpush1.bf16.msra.mxu0 0
    %935 = vmatprep.subr.bf16.mxu0 0
    %936 = vmatpush1.bf16.msra.mxu0 0
    %937 = vmatprep.subr.bf16.mxu0 0
    %938 = vmatpush1.bf16.msra.mxu0 0
    %939 = vmatprep.subr.bf16.mxu0 0
    %940 = vmatpush1.bf16.msra.mxu0 0
    %941 = vmatprep.subr.bf16.mxu0 0
    %942 = vmatpush1.bf16.msra.mxu0 0
    %943 = vmatprep.subr.bf16.mxu0 0
    %944 = vmatpush1.bf16.msra.mxu0 0
    %945 = vmatprep.subr.bf16.mxu0 0
    %946 = vmatpush1.bf16.msra.mxu0 0
    %947 = vmatprep.subr.bf16.mxu0 0
    %948 = vmatpush1.bf16.msra.mxu0 0
    %949 = vmatprep.subr.bf16.mxu0 0
    %950 = vmatpush1.bf16.msra.mxu0 0
    %951 = vmatprep.subr.bf16.mxu0 0
    %952 = vmatpush1.bf16.msra.mxu0 0
    %953 = vmatprep.subr.bf16.mxu0 0
    %954 = vmatpush1.bf16.msra.mxu0 0
    %955 = vmatprep.subr.bf16.mxu0 0
    %956 = vmatpush1.bf16.msra.mxu0 0
    %957 = vmatprep.mubr.bf16.mxu0 0
    %958 = vmatmul.mubr.bf16.gmra.mrb[0].mxu0 %v923
    %v959 = vpop.f32.mrb[0].mxu0
    %v960 = vadd.f32 0.0, %v959
    %v961 = vpop.f32.mrb[0].mxu0
    %v962 = vpop.f32.mrb[0].mxu0
    %v963 = vadd.f32 0.0, %v962
    %v964 = vpop.f32.mrb[0].mxu0
    %965 = vdwg.mxu0
    %970 = vrot.lane.b32.xlu0 %v913, 16
    %v971 = vpop.permute.xlu0 %970
    %972 = vrot.lane.b32.xlu0 %v916, 16
    %v973 = vpop.permute.xlu0 %972
    %974 = vrot.lane.b32.xlu0 %v960, 16
    %v975 = vpop.permute.xlu0 %974
    %976 = vrot.lane.b32.xlu0 %v963, 16
    %v977 = vpop.permute.xlu0 %976
    %vm982 = vcmask 195712
    %983 = vst.msk [vmem:[#allocation2] sm:$0xff] %vm982, %v971
    %984 = vst.msk [vmem:[#allocation2 + $0x8] sm:$0xff] %vm982, %v973
    %985 = vst.msk [vmem:[#allocation2 + $0x10] sm:$0xff] %vm982, %v975
    %986 = vst.msk [vmem:[#allocation2 + $0x18] sm:$0xff] %vm982, %v977
    %987 = vrot.lane.b32.xlu0 %v213, 104
    %v988 = vpop.permute.xlu0 %987
    %989 = vrot.lane.b32.xlu0 %v213, 72
    %v990 = vpop.permute.xlu0 %989
    %v992 = vsel %vm218, %v988, 0
    %v995 = vsel %vm218, %v990, 0
    %997 = vmatprep.subr.bf16.mxu0 0
    %998 = vmatpush1.bf16.xpose.msra.mxu0 %v995
    %999 = vmatprep.subr.bf16.mxu0 0
    %1000 = vmatpush1.bf16.xpose.msra.mxu0 0
    %1001 = vmatprep.subr.bf16.mxu0 0
    %1002 = vmatpush1.bf16.xpose.msra.mxu0 0
    %1003 = vmatprep.subr.bf16.mxu0 0
    %1004 = vmatpush1.bf16.xpose.msra.mxu0 0
    %1005 = vmatprep.subr.bf16.mxu0 0
    %1006 = vmatpush1.bf16.xpose.msra.mxu0 0
    %1007 = vmatprep.subr.bf16.mxu0 0
    %1008 = vmatpush1.bf16.xpose.msra.mxu0 0
    %1009 = vmatprep.subr.bf16.mxu0 0
    %1010 = vmatpush1.bf16.xpose.msra.mxu0 0
    %1011 = vmatprep.subr.bf16.mxu0 0
    %1012 = vmatpush1.bf16.xpose.msra.mxu0 0
    %1013 = vmatprep.subr.bf16.mxu0 0
    %1014 = vmatpush1.bf16.xpose.msra.mxu0 0
    %1015 = vmatprep.subr.bf16.mxu0 0
    %1016 = vmatpush1.bf16.xpose.msra.mxu0 0
    %1017 = vmatprep.subr.bf16.mxu0 0
    %1018 = vmatpush1.bf16.xpose.msra.mxu0 0
    %1019 = vmatprep.subr.bf16.mxu0 0
    %1020 = vmatpush1.bf16.xpose.msra.mxu0 0
    %1021 = vmatprep.subr.bf16.mxu0 0
    %1022 = vmatpush1.bf16.xpose.msra.mxu0 0
    %1023 = vmatprep.subr.bf16.mxu0 0
    %1024 = vmatpush1.bf16.xpose.msra.mxu0 0
    %1025 = vmatprep.subr.bf16.mxu0 0
    %1026 = vmatpush1.bf16.xpose.msra.mxu0 0
    %1027 = vmatprep.subr.bf16.mxu0 0
    %1028 = vmatpush1.bf16.xpose.msra.mxu0 0
    %1029 = vmatprep.mubr.bf16.mxu0 0
    %1030 = vmatmul.mubr.bf16.gmra.mrb[0].mxu0 %v992
    %v1031 = vpop.f32.mrb[0].mxu0
    %v1032 = vadd.f32 0.0, %v1031
    %v1033 = vpop.f32.mrb[0].mxu0
    %v1034 = vpop.f32.mrb[0].mxu0
    %v1035 = vadd.f32 0.0, %v1034
    %v1036 = vpop.f32.mrb[0].mxu0
    %1037 = vdwg.mxu0
    %1038 = vrot.lane.b32.xlu0 %v214, 104
    %v1039 = vpop.permute.xlu0 %1038
    %1040 = vrot.lane.b32.xlu0 %v214, 72
    %v1041 = vpop.permute.xlu0 %1040
    %v1043 = vsel %vm218, %v1039, 0
    %v1046 = vsel %vm218, %v1041, 0
    %1048 = vmatprep.subr.bf16.mxu0 0
    %1049 = vmatpush1.bf16.xpose.msra.mxu0 %v1046
    %1050 = vmatprep.subr.bf16.mxu0 0
    %1051 = vmatpush1.bf16.xpose.msra.mxu0 0
    %1052 = vmatprep.subr.bf16.mxu0 0
    %1053 = vmatpush1.bf16.xpose.msra.mxu0 0
    %1054 = vmatprep.subr.bf16.mxu0 0
    %1055 = vmatpush1.bf16.xpose.msra.mxu0 0
    %1056 = vmatprep.subr.bf16.mxu0 0
    %1057 = vmatpush1.bf16.xpose.msra.mxu0 0
    %1058 = vmatprep.subr.bf16.mxu0 0
    %1059 = vmatpush1.bf16.xpose.msra.mxu0 0
    %1060 = vmatprep.subr.bf16.mxu0 0
    %1061 = vmatpush1.bf16.xpose.msra.mxu0 0
    %1062 = vmatprep.subr.bf16.mxu0 0
    %1063 = vmatpush1.bf16.xpose.msra.mxu0 0
    %1064 = vmatprep.subr.bf16.mxu0 0
    %1065 = vmatpush1.bf16.xpose.msra.mxu0 0
    %1066 = vmatprep.subr.bf16.mxu0 0
    %1067 = vmatpush1.bf16.xpose.msra.mxu0 0
    %1068 = vmatprep.subr.bf16.mxu0 0
    %1069 = vmatpush1.bf16.xpose.msra.mxu0 0
    %1070 = vmatprep.subr.bf16.mxu0 0
    %1071 = vmatpush1.bf16.xpose.msra.mxu0 0
    %1072 = vmatprep.subr.bf16.mxu0 0
    %1073 = vmatpush1.bf16.xpose.msra.mxu0 0
    %1074 = vmatprep.subr.bf16.mxu0 0
    %1075 = vmatpush1.bf16.xpose.msra.mxu0 0
    %1076 = vmatprep.subr.bf16.mxu0 0
    %1077 = vmatpush1.bf16.xpose.msra.mxu0 0
    %1078 = vmatprep.subr.bf16.mxu0 0
    %1079 = vmatpush1.bf16.xpose.msra.mxu0 0
    %1080 = vmatprep.mubr.bf16.mxu0 0
    %1081 = vmatmul.mubr.bf16.gmra.mrb[0].mxu0 %v1043
    %v1082 = vpop.f32.mrb[0].mxu0
    %v1083 = vadd.f32 0.0, %v1082
    %v1084 = vpop.f32.mrb[0].mxu0
    %v1085 = vpop.f32.mrb[0].mxu0
    %v1086 = vadd.f32 0.0, %v1085
    %v1087 = vpop.f32.mrb[0].mxu0
    %1088 = vdwg.mxu0
    %v1089 = vsel %vm316, %v1032, -inf
    %1090 = vmax.xlane.f32.xlu0 %v1089
    %v1091 = vpop.xlane.xlu0 %1090
    %v1092 = vsel %vm316, %v1035, -inf
    %1093 = vmax.xlane.f32.xlu0 %v1092
    %v1094 = vpop.xlane.xlu0 %1093
    %v1095 = vsel %vm316, %v1083, -inf
    %1096 = vmax.xlane.f32.xlu0 %v1095
    %v1097 = vpop.xlane.xlu0 %1096
    %v1098 = vsel %vm316, %v1086, -inf
    %1099 = vmax.xlane.f32.xlu0 %v1098
    %v1100 = vpop.xlane.xlu0 %1099
    %v1101 = vsub.f32 %v1032, %v1091
    %v1102 = vsub.f32 %v1035, %v1094
    %v1103 = vsub.f32 %v1083, %v1097
    %v1104 = vsub.f32 %v1086, %v1100
    %v1105 = vmul.f32 %v1101, 1.442695
    %v1106 = vpow.pop %v1105
    %v1107 = vmul.f32 %v1102, 1.442695
    %v1108 = vpow.pop %v1107
    %v1109 = vmul.f32 %v1103, 1.442695
    %v1110 = vpow.pop %v1109
    %v1111 = vmul.f32 %v1104, 1.442695
    %v1112 = vpow.pop %v1111
    %v1113 = vsel %vm316, %v1106, 0.0
    %1114 = vadd.xlane.f32.xlu0 %v1113
    %v1115 = vpop.xlane.xlu0 %1114
    %v1116 = vsel %vm316, %v1108, 0.0
    %1117 = vadd.xlane.f32.xlu0 %v1116
    %v1118 = vpop.xlane.xlu0 %1117
    %v1119 = vsel %vm316, %v1110, 0.0
    %1120 = vadd.xlane.f32.xlu0 %v1119
    %v1121 = vpop.xlane.xlu0 %1120
    %v1122 = vsel %vm316, %v1112, 0.0
    %1123 = vadd.xlane.f32.xlu0 %v1122
    %v1124 = vpop.xlane.xlu0 %1123
    %v1125 = vrcp.pop %v1115
    %v1126 = vrcp.pop %v1118
    %v1127 = vrcp.pop %v1121
    %v1128 = vrcp.pop %v1124
    %v1129 = vmul.f32 %v1106, %v1125
    %v1130 = vmul.f32 %v1108, %v1126
    %v1131 = vmul.f32 %v1110, %v1127
    %v1132 = vmul.f32 %v1112, %v1128
    %v1133 = vpack.c.bf16 %v1130, %v1129
    %v1134 = vpack.c.bf16 %v1132, %v1131
    %1135 = vrot.lane.b32.xlu0 %v213, 40
    %v1136 = vpop.permute.xlu0 %1135
    %v1139 = vsel %vm316, %v1133, 0
    %1141 = vmatprep.subr.bf16.mxu0 0
    %1142 = vmatpush1.bf16.msra.mxu0 %v1136
    %1143 = vmatprep.subr.bf16.mxu0 0
    %1144 = vmatpush1.bf16.msra.mxu0 0
    %1145 = vmatprep.subr.bf16.mxu0 0
    %1146 = vmatpush1.bf16.msra.mxu0 0
    %1147 = vmatprep.subr.bf16.mxu0 0
    %1148 = vmatpush1.bf16.msra.mxu0 0
    %1149 = vmatprep.subr.bf16.mxu0 0
    %1150 = vmatpush1.bf16.msra.mxu0 0
    %1151 = vmatprep.subr.bf16.mxu0 0
    %1152 = vmatpush1.bf16.msra.mxu0 0
    %1153 = vmatprep.subr.bf16.mxu0 0
    %1154 = vmatpush1.bf16.msra.mxu0 0
    %1155 = vmatprep.subr.bf16.mxu0 0
    %1156 = vmatpush1.bf16.msra.mxu0 0
    %1157 = vmatprep.subr.bf16.mxu0 0
    %1158 = vmatpush1.bf16.msra.mxu0 0
    %1159 = vmatprep.subr.bf16.mxu0 0
    %1160 = vmatpush1.bf16.msra.mxu0 0
    %1161 = vmatprep.subr.bf16.mxu0 0
    %1162 = vmatpush1.bf16.msra.mxu0 0
    %1163 = vmatprep.subr.bf16.mxu0 0
    %1164 = vmatpush1.bf16.msra.mxu0 0
    %1165 = vmatprep.subr.bf16.mxu0 0
    %1166 = vmatpush1.bf16.msra.mxu0 0
    %1167 = vmatprep.subr.bf16.mxu0 0
    %1168 = vmatpush1.bf16.msra.mxu0 0
    %1169 = vmatprep.subr.bf16.mxu0 0
    %1170 = vmatpush1.bf16.msra.mxu0 0
    %1171 = vmatprep.subr.bf16.mxu0 0
    %1172 = vmatpush1.bf16.msra.mxu0 0
    %1173 = vmatprep.mubr.bf16.mxu0 0
    %1174 = vmatmul.mubr.bf16.gmra.mrb[0].mxu0 %v1139
    %v1175 = vpop.f32.mrb[0].mxu0
    %v1176 = vadd.f32 0.0, %v1175
    %v1177 = vpop.f32.mrb[0].mxu0
    %v1178 = vpop.f32.mrb[0].mxu0
    %v1179 = vadd.f32 0.0, %v1178
    %v1180 = vpop.f32.mrb[0].mxu0
    %1181 = vdwg.mxu0
    %1182 = vrot.lane.b32.xlu0 %v214, 40
    %v1183 = vpop.permute.xlu0 %1182
    %v1186 = vsel %vm316, %v1134, 0
    %1188 = vmatprep.subr.bf16.mxu0 0
    %1189 = vmatpush1.bf16.msra.mxu0 %v1183
    %1190 = vmatprep.subr.bf16.mxu0 0
    %1191 = vmatpush1.bf16.msra.mxu0 0
    %1192 = vmatprep.subr.bf16.mxu0 0
    %1193 = vmatpush1.bf16.msra.mxu0 0
    %1194 = vmatprep.subr.bf16.mxu0 0
    %1195 = vmatpush1.bf16.msra.mxu0 0
    %1196 = vmatprep.subr.bf16.mxu0 0
    %1197 = vmatpush1.bf16.msra.mxu0 0
    %1198 = vmatprep.subr.bf16.mxu0 0
    %1199 = vmatpush1.bf16.msra.mxu0 0
    %1200 = vmatprep.subr.bf16.mxu0 0
    %1201 = vmatpush1.bf16.msra.mxu0 0
    %1202 = vmatprep.subr.bf16.mxu0 0
    %1203 = vmatpush1.bf16.msra.mxu0 0
    %1204 = vmatprep.subr.bf16.mxu0 0
    %1205 = vmatpush1.bf16.msra.mxu0 0
    %1206 = vmatprep.subr.bf16.mxu0 0
    %1207 = vmatpush1.bf16.msra.mxu0 0
    %1208 = vmatprep.subr.bf16.mxu0 0
    %1209 = vmatpush1.bf16.msra.mxu0 0
    %1210 = vmatprep.subr.bf16.mxu0 0
    %1211 = vmatpush1.bf16.msra.mxu0 0
    %1212 = vmatprep.subr.bf16.mxu0 0
    %1213 = vmatpush1.bf16.msra.mxu0 0
    %1214 = vmatprep.subr.bf16.mxu0 0
    %1215 = vmatpush1.bf16.msra.mxu0 0
    %1216 = vmatprep.subr.bf16.mxu0 0
    %1217 = vmatpush1.bf16.msra.mxu0 0
    %1218 = vmatprep.subr.bf16.mxu0 0
    %1219 = vmatpush1.bf16.msra.mxu0 0
    %1220 = vmatprep.mubr.bf16.mxu0 0
    %1221 = vmatmul.mubr.bf16.gmra.mrb[0].mxu0 %v1186
    %v1222 = vpop.f32.mrb[0].mxu0
    %v1223 = vadd.f32 0.0, %v1222
    %v1224 = vpop.f32.mrb[0].mxu0
    %v1225 = vpop.f32.mrb[0].mxu0
    %v1226 = vadd.f32 0.0, %v1225
    %v1227 = vpop.f32.mrb[0].mxu0
    %1228 = vdwg.mxu0
    %1233 = vrot.lane.b32.xlu0 %v1176, 24
    %v1234 = vpop.permute.xlu0 %1233
    %1235 = vrot.lane.b32.xlu0 %v1179, 24
    %v1236 = vpop.permute.xlu0 %1235
    %1237 = vrot.lane.b32.xlu0 %v1223, 24
    %v1238 = vpop.permute.xlu0 %1237
    %1239 = vrot.lane.b32.xlu0 %v1226, 24
    %v1240 = vpop.permute.xlu0 %1239
    %vm1245 = vcmask 261312
    %1246 = vst.msk [vmem:[#allocation2] sm:$0xff] %vm1245, %v1234
    %1247 = vst.msk [vmem:[#allocation2 + $0x8] sm:$0xff] %vm1245, %v1236
    %1248 = vst.msk [vmem:[#allocation2 + $0x10] sm:$0xff] %vm1245, %v1238
    %1249 = vst.msk [vmem:[#allocation2 + $0x18] sm:$0xff] %vm1245, %v1240
    %v1250 = vld [vmem:[#allocation2] sm:$0xff]
    %v1251 = vld [vmem:[#allocation2 + $0x8] sm:$0xff]
    %v1252 = vld [vmem:[#allocation2 + $0x10] sm:$0xff]
    %v1253 = vld [vmem:[#allocation2 + $0x18] sm:$0xff]
    %v1254 = vpack.c.bf16 %v1251, %v1250
    %v1255 = vpack.c.bf16 %v1253, %v1252
    %v1256 = vld [vmem:[%s4] sm:$0xf]
    %v1257 = vld [vmem:[%s4 + $0x4] sm:$0xf]
    %v1258 = vld [vmem:[%s4 + $0x8] sm:$0xf]
    %v1259 = vld [vmem:[%s4 + $0xc] sm:$0xf]
    %v1260 = vld [vmem:[%s5 + $0x1] sm:$0x1]
    %v1261 = vlaneseq
    %v1262 = vshrl.u32 %v1261, 7
    %v1263 = vsub.s32 0, %v1262
    %v1264 = vrot.slane %v1260, %v1263
    %v1269 = vunpack.c.l.b16 %v1256
    %v1270 = vunpack.c.l.b16 %v1257
    %v1271 = vunpack.c.l.b16 %v1258
    %v1272 = vunpack.c.l.b16 %v1259
    %v1273 = vpack.c.b16 %v1270, %v1269
    %v1274 = vpack.c.b16 %v1272, %v1271
    %v1278 = vsel %vm157, %v1254, 0
    %v1281 = vsel %vm157, %v1255, 0
    %1283 = vmatprep.subr.bf16.mxu0 0
    %1284 = vmatpush1.bf16.msra.mxu0 %v1273
    %1285 = vmatprep.subr.bf16.mxu0 0
    %1286 = vmatpush1.bf16.msra.mxu0 %v1274
    %1287 = vmatprep.subr.bf16.mxu0 0
    %1288 = vmatpush1.bf16.msra.mxu0 0
    %1289 = vmatprep.subr.bf16.mxu0 0
    %1290 = vmatpush1.bf16.msra.mxu0 0
    %1291 = vmatprep.subr.bf16.mxu0 0
    %1292 = vmatpush1.bf16.msra.mxu0 0
    %1293 = vmatprep.subr.bf16.mxu0 0
    %1294 = vmatpush1.bf16.msra.mxu0 0
    %1295 = vmatprep.subr.bf16.mxu0 0
    %1296 = vmatpush1.bf16.msra.mxu0 0
    %1297 = vmatprep.subr.bf16.mxu0 0
    %1298 = vmatpush1.bf16.msra.mxu0 0
    %1299 = vmatprep.subr.bf16.mxu0 0
    %1300 = vmatpush1.bf16.msra.mxu0 0
    %1301 = vmatprep.subr.bf16.mxu0 0
    %1302 = vmatpush1.bf16.msra.mxu0 0
    %1303 = vmatprep.subr.bf16.mxu0 0
    %1304 = vmatpush1.bf16.msra.mxu0 0
    %1305 = vmatprep.subr.bf16.mxu0 0
    %1306 = vmatpush1.bf16.msra.mxu0 0
    %1307 = vmatprep.subr.bf16.mxu0 0
    %1308 = vmatpush1.bf16.msra.mxu0 0
    %1309 = vmatprep.subr.bf16.mxu0 0
    %1310 = vmatpush1.bf16.msra.mxu0 0
    %1311 = vmatprep.subr.bf16.mxu0 0
    %1312 = vmatpush1.bf16.msra.mxu0 0
    %1313 = vmatprep.subr.bf16.mxu0 0
    %1314 = vmatpush1.bf16.msra.mxu0 0
    %1315 = vmatprep.mubr.bf16.mxu0 0
    %1316 = vmatmul.mubr.bf16.gmra.mrb[0].mxu0 %v1278
    %v1317 = vpop.f32.mrb[0].mxu0
    %v1318 = vadd.f32 %v1264, %v1317
    %v1319 = vpop.f32.mrb[0].mxu0
    %v1320 = vpop.f32.mrb[0].mxu0
    %v1321 = vadd.f32 %v1264, %v1320
    %v1322 = vpop.f32.mrb[0].mxu0
    %1323 = vmatprep.mubr.bf16.mxu0 0
    %1324 = vmatmul.mubr.bf16.gmra.mrb[0].mxu0 %v1281
    %v1325 = vpop.f32.mrb[0].mxu0
    %v1326 = vadd.f32 %v1264, %v1325
    %v1327 = vpop.f32.mrb[0].mxu0
    %v1328 = vpop.f32.mrb[0].mxu0
    %v1329 = vadd.f32 %v1264, %v1328
    %v1330 = vpop.f32.mrb[0].mxu0
    %1331 = vdwg.mxu0
    %v1332 = vsel %vm157, %v1318, 0.0
    %1333 = vadd.xlane.f32.xlu0 %v1332
    %v1334 = vpop.xlane.xlu0 %1333
    %v1335 = vsel %vm157, %v1321, 0.0
    %1336 = vadd.xlane.f32.xlu0 %v1335
    %v1337 = vpop.xlane.xlu0 %1336
    %v1338 = vsel %vm157, %v1326, 0.0
    %1339 = vadd.xlane.f32.xlu0 %v1338
    %v1340 = vpop.xlane.xlu0 %1339
    %v1341 = vsel %vm157, %v1329, 0.0
    %1342 = vadd.xlane.f32.xlu0 %v1341
    %v1343 = vpop.xlane.xlu0 %1342
    %v1344 = vrcp.pop 32.0
    %v1345 = vmul.f32 %v1334, %v1344
    %v1346 = vmul.f32 %v1337, %v1344
    %v1347 = vmul.f32 %v1340, %v1344
    %v1348 = vmul.f32 %v1343, %v1344
    %v1349 = vsub.f32 %v1318, %v1345
    %v1350 = vsub.f32 %v1321, %v1346
    %v1351 = vsub.f32 %v1326, %v1347
    %v1352 = vsub.f32 %v1329, %v1348
    %v1353 = vmul.f32 %v1349, %v1349
    %v1354 = vmul.f32 %v1350, %v1350
    %v1355 = vmul.f32 %v1351, %v1351
    %v1356 = vmul.f32 %v1352, %v1352
    %v1357 = vsel %vm157, %v1353, 0.0
    %1358 = vadd.xlane.f32.xlu0 %v1357
    %v1359 = vpop.xlane.xlu0 %1358
    %v1360 = vsel %vm157, %v1354, 0.0
    %1361 = vadd.xlane.f32.xlu0 %v1360
    %v1362 = vpop.xlane.xlu0 %1361
    %v1363 = vsel %vm157, %v1355, 0.0
    %1364 = vadd.xlane.f32.xlu0 %v1363
    %v1365 = vpop.xlane.xlu0 %1364
    %v1366 = vsel %vm157, %v1356, 0.0
    %1367 = vadd.xlane.f32.xlu0 %v1366
    %v1368 = vpop.xlane.xlu0 %1367
    %v1369 = vmul.f32 %v1359, %v1344
    %v1370 = vmul.f32 %v1362, %v1344
    %v1371 = vmul.f32 %v1365, %v1344
    %v1372 = vmul.f32 %v1368, %v1344
    %v1373 = vld [vmem:[%s5 + $0x2] sm:$0x1]
    %v1374 = vld [vmem:[%s5 + $0x3] sm:$0x1]
    %v1375 = vadd.f32 %v1369, 1e-05
    %v1376 = vadd.f32 %v1370, 1e-05
    %v1377 = vadd.f32 %v1371, 1e-05
    %v1378 = vadd.f32 %v1372, 1e-05
    %v1379 = vrsqrt.pop %v1375
    %v1380 = vrsqrt.pop %v1376
    %v1381 = vrsqrt.pop %v1377
    %v1382 = vrsqrt.pop %v1378
    %v1383 = vmul.f32 %v1349, %v1379
    %v1384 = vmul.f32 %v1350, %v1380
    %v1385 = vmul.f32 %v1351, %v1381
    %v1386 = vmul.f32 %v1352, %v1382
    %v1387 = vlaneseq
    %v1388 = vshrl.u32 %v1387, 7
    %v1389 = vsub.s32 0, %v1388
    %v1390 = vrot.slane %v1373, %v1389
    %v1391 = vmul.f32 %v1383, %v1390
    %v1392 = vmul.f32 %v1384, %v1390
    %v1393 = vmul.f32 %v1385, %v1390
    %v1394 = vmul.f32 %v1386, %v1390
    %v1395 = vlaneseq
    %v1396 = vshrl.u32 %v1395, 7
    %v1397 = vsub.s32 0, %v1396
    %v1398 = vrot.slane %v1374, %v1397
    %v1399 = vadd.f32 %v1391, %v1398
    %v1400 = vadd.f32 %v1392, %v1398
    %v1401 = vadd.f32 %v1393, %v1398
    %v1402 = vadd.f32 %v1394, %v1398
    %v1403 = vld [vmem:[%s5 + $0x4] sm:$0x1]
    %v1404 = vlaneseq
    %v1405 = vshrl.u32 %v1404, 7
    %v1406 = vsub.s32 0, %v1405
    %v1407 = vrot.slane %v1403, %v1406
    %v1408 = vmul.f32 %v1399, %v1407
    %v1409 = vmul.f32 %v1400, %v1407
    %v1410 = vmul.f32 %v1401, %v1407
    %v1411 = vmul.f32 %v1402, %v1407
    %v1412 = vsel %vm157, %v1408, 0.0
    %1413 = vadd.xlane.f32.xlu0 %v1412
    %v1414 = vpop.xlane.xlu0 %1413
    %v1415 = vsel %vm157, %v1409, 0.0
    %1416 = vadd.xlane.f32.xlu0 %v1415
    %v1417 = vpop.xlane.xlu0 %1416
    %v1418 = vsel %vm157, %v1410, 0.0
    %1419 = vadd.xlane.f32.xlu0 %v1418
    %v1420 = vpop.xlane.xlu0 %1419
    %v1421 = vsel %vm157, %v1411, 0.0
    %1422 = vadd.xlane.f32.xlu0 %v1421
    %v1423 = vpop.xlane.xlu0 %1422
    %v1424 = vld [vmem:[%s5 + $0x5] sm:$0x1]
    %s1426 = vtos %v1424
    %v1427 = vstv %s1426
    %v1429 = vadd.f32 %v1414, %v1427
    %v1430 = vadd.f32 %v1417, %v1427
    %v1431 = vadd.f32 %v1420, %v1427
    %v1432 = vadd.f32 %v1423, %v1427
    %v1433 = vxor.u32 %v1429, 2147483648
    %v1434 = vxor.u32 %v1430, 2147483648
    %v1435 = vxor.u32 %v1431, 2147483648
    %v1436 = vxor.u32 %v1432, 2147483648
    %v1437 = vmul.f32 %v1433, 1.442695
    %v1438 = vpow.pop %v1437
    %v1439 = vmul.f32 %v1434, 1.442695
    %v1440 = vpow.pop %v1439
    %v1441 = vmul.f32 %v1435, 1.442695
    %v1442 = vpow.pop %v1441
    %v1443 = vmul.f32 %v1436, 1.442695
    %v1444 = vpow.pop %v1443
    %v1445 = vadd.f32 %v1438, 1.0
    %v1446 = vadd.f32 %v1440, 1.0
    %v1447 = vadd.f32 %v1442, 1.0
    %v1448 = vadd.f32 %v1444, 1.0
    %v1449 = vrcp.pop %v1445
    %v1450 = vmul.f32 1.0, %v1449
    %v1451 = vrcp.pop %v1446
    %v1452 = vmul.f32 1.0, %v1451
    %v1453 = vrcp.pop %v1447
    %v1454 = vmul.f32 1.0, %v1453
    %v1455 = vrcp.pop %v1448
    %v1456 = vmul.f32 1.0, %v1455
    %v1461 = vlaneseq
    %v1462 = vand.u32 %v1461, 127
    %v1463 = vlaneseq
    %v1464 = vshrl.u32 %v1463, 7
    %v1465 = vsub.s32 %v1462, %v1464
    %v1466 = vrot.slane %v1450, %v1465
    %v1467 = vadd.s32 %v1462, 4294967288
    %v1468 = vlaneseq
    %v1469 = vshrl.u32 %v1468, 7
    %v1470 = vsub.s32 %v1467, %v1469
    %v1471 = vrot.slane %v1452, %v1470
    %v1472 = vsel %vm719, %v1471, %v1466
    %v1473 = vlaneseq
    %v1474 = vshrl.u32 %v1473, 7
    %v1475 = vsub.s32 %v1462, %v1474
    %v1476 = vrot.slane %v1454, %v1475
    %v1477 = vlaneseq
    %v1478 = vshrl.u32 %v1477, 7
    %v1479 = vsub.s32 %v1467, %v1478
    %v1480 = vrot.slane %v1456, %v1479
    %v1481 = vsel %vm719, %v1480, %v1476
    %vm1484 = vcmask 122880
    %1485 = vst.msk [vmem:[#allocation3] sm:$0x1] %vm1484, %v1472
    %1486 = vst.msk [vmem:[#allocation3 + $0x1] sm:$0x1] %vm1484, %v1481
    // Predicated region
    $region26: #{tpu_custom_call.1} parent=1 // pred_check
      _
    $region27: #{tpu_custom_call.1} parent=1 // pred_check_branch
      %1488 = sbr.rel (0) target = $region29
    $region28: #{tpu_custom_call.1} parent=1 // pred_region
      %s1490 = ssub.s32 32, 32
      %1491 = vsyncadd [#allocation4], %s1490
      %s1492 = sshll.u32 [#allocation3], 4
      %s1493 = int_to_ptr.vmem [resolvable:$true] %s1492
      %1498 = dma.vmem_to_hbm [thread:$0]  %s1493, 32, %s6, [#allocation4], 16, 16, 1
    $region29: #{tpu_custom_call.1} parent=1 // pred_fallthru
      _
    // Predicated region
    $region30: #{tpu_custom_call.1} parent=1 // pred_check
      _
    $region31: #{tpu_custom_call.1} parent=1 // pred_check_branch
      %1500 = sbr.rel (0) target = $region33
    $region32: #{tpu_custom_call.1} parent=1 // pred_region
      %1501 = dma.done [#allocation4], 32
    $region33: #{tpu_custom_call.1} parent=1 // pred_fallthru
      _
    %1502 = vsyncpa [#allocation4], 1

</llo_original>
